<compile_context>
chip_gen: v5e
topology: v5e:2x2
jax: 0.10.0
libtpu: 0.0.40
codegen_flags: <defaults>
</compile_context>

<pallas_src>
import functools

import jax
import jax.numpy as jnp
from jax.experimental import pallas as pl
from jax.experimental.pallas import tpu as pltpu

_HIGHEST = jax.lax.Precision.HIGHEST


def _round_up(x, m):
    return ((x + m - 1) // m) * m


def _vmem_budget_bytes():
    """Per-generation scoped-VMEM budget (review: ~48 MiB on v7x, ~96 MiB on v5e/v6e)."""
    cap = 64 * 1024 * 1024
    try:
        info = pltpu.get_tpu_info()
        cap = int(getattr(info, "vmem_capacity_bytes", cap))
    except Exception:
        pass
    # Leave ~25% headroom for compiler internal scratch, semaphores and resident weights.
    return (cap * 3) // 4


def _pick_batch_tile(batch, per_elem_bytes, budget, cap=8):
    """Largest divisor of `batch` (<= cap) whose working set fits the VMEM budget."""
    bt = max(1, min(batch, cap, budget // max(per_elem_bytes, 1)))
    while batch % bt:
        bt -= 1
    return bt


# --------------------------------------------------------------------------- #
# Geometry: flattened phase layout for the depthwise conv
# --------------------------------------------------------------------------- #
def _dw_geometry(H, W, ksize, stride):
    p = (ksize - 1) // 2
    Hp, Wp = H + 2 * p, W + 2 * p
    oh = (Hp - ksize) // stride + 1           # == PyTorch conv output size
    ow = (Wp - ksize) // stride + 1
    PH = -(-Hp // stride)                     # per-phase rows
    PW = -(-Wp // stride)                     # per-phase cols == flat output row pitch
    Lout = oh * PW                            # flat output length (garbage cols included)
    Lpad = _round_up(Lout, 128)               # lane-dense last dim
    r_max = (ksize - 1) // stride             # max in-phase tap offset (rows == cols)
    Lin = max(PH * PW, r_max * PW + r_max + Lpad)
    return dict(p=p, Hp=Hp, Wp=Wp, oh=oh, ow=ow, PH=PH, PW=PW,
                Lout=Lout, Lpad=Lpad, Lin=Lin)


def _phase_flatten(x, ksize, stride, g):
    """Pad + phase-decompose + flatten the input: (s*s, B, C, Lin).

    Tap (di, dj) of the strided depthwise conv becomes a *contiguous* lane slice
    at offset (di//s)*PW + (dj//s) of phase (di%s, dj%s) — no strided access in-kernel.
    """
    B, C, _, _ = x.shape
    p = g["p"]
    xp = jnp.pad(x, ((0, 0), (0, 0), (p, p), (p, p)))
    phases = []
    for i0 in range(stride):
        for j0 in range(stride):
            ph = xp[:, :, i0::stride, j0::stride]
            ph = jnp.pad(ph, ((0, 0), (0, 0),
                              (0, g["PH"] - ph.shape[2]),
                              (0, g["PW"] - ph.shape[3])))
            phases.append(ph.reshape(B, C, g["PH"] * g["PW"]))
    xph = jnp.stack(phases, axis=0)                               # (s*s, B, C, PH*PW)
    xph = jnp.pad(xph, ((0, 0), (0, 0), (0, 0),
                        (0, g["Lin"] - g["PH"] * g["PW"])))
    return xph


# --------------------------------------------------------------------------- #
# Kernel A: depthwise conv + fused global-avg-pool + SE MLP -> (dw activation, gate)
# --------------------------------------------------------------------------- #
def _dw_se_kernel(xph_ref, wtap_ref, mask_ref, w1_ref, b1_ref, a1_ref,
                  w2_ref, b2_ref, dw_ref, gate_ref, *,
                  ksize, stride, PW, Lpad, inv_hw):
    # xph_ref : (s*s, bt, C, Lin)   flattened input phases (activation dtype)
    # wtap_ref: (k*k, C, 1) f32     per-channel depthwise taps (VMEM, vectorised)
    # mask_ref: (1, 1, Lpad) f32    1.0 on valid output lanes (exact mean)
    # dw_ref  : (bt, C, Lpad)       lane-dense depthwise activation
    # gate_ref: (bt, C, 1) f32      SE channel gate
    acc = jnp.zeros(dw_ref.shape, jnp.float32)
    for tap in range(ksize * ksize):                   # static unroll, k*k small
        di, dj = divmod(tap, ksize)
        ph = (di % stride) * stride + (dj % stride)
        off = (di // stride) * PW + (dj // stride)
        xs = xph_ref[ph, :, :, pl.ds(off, Lpad)].astype(jnp.float32)
        acc = acc + xs * wtap_ref[tap]                 # (C,1) broadcast over lanes/batch

    dw_ref[...] = acc.astype(dw_ref.dtype)             # single lane-dense store

    # Fused SE: exact spatial mean (masked sum) -> Linear -> PReLU -> Linear.
    pooled = jnp.sum(acc * mask_ref[...], axis=-1) * inv_hw            # (bt, C)
    y1 = jnp.dot(pooled, w1_ref[...], preferred_element_type=jnp.float32,
                 precision=_HIGHEST) + b1_ref[...]                     # (bt, Cr)
    y1 = jnp.where(y1 >= 0, y1, a1_ref[...] * y1)                      # PReLU
    y2 = jnp.dot(y1, w2_ref[...], preferred_element_type=jnp.float32,
                 precision=_HIGHEST) + b2_ref[...]                     # (bt, C)
    gate_ref[...] = y2[:, :, None].astype(jnp.float32)


def depthwise_se(x, w_dw, w1, b1, alpha1, w2, b2, *, ksize, stride):
    """Depthwise conv + SE squeeze/excite.  Returns (dw_flat, gate, geometry)."""
    B, C, H, W = x.shape
    g = _dw_geometry(H, W, ksize, stride)
    Cr = w1.shape[1]
    elt = x.dtype.itemsize
    nphase = stride * stride
    kk = ksize * ksize

    xph = _phase_flatten(x, ksize, stride, g)

    wtap = jnp.transpose(w_dw.reshape(C, kk))[:, :, None].astype(jnp.float32)  # (k*k, C, 1)
    idx = jnp.arange(g["Lpad"])
    mask = ((idx < g["Lout"]) & (idx % g["PW"] < g["ow"])).astype(jnp.float32)
    mask = mask.reshape(1, 1, g["Lpad"])

    w1f = w1.astype(jnp.float32)
    w2f = w2.astype(jnp.float32)
    b1f = b1.reshape(1, Cr).astype(jnp.float32)
    a1f = alpha1.reshape(1, Cr).astype(jnp.float32)
    b2f = b2.reshape(1, C).astype(jnp.float32)

    budget = _vmem_budget_bytes()
    per_b = (2 * (nphase * C * g["Lin"] + C * g["Lpad"]) * elt   # double-buffered in/out
             + C * g["Lpad"] * 4                                 # f32 accumulator
             + 2 * C * 4)
    bt = _pick_batch_tile(B, per_b, budget)

    weight_bytes = sum(int(a.size) * 4 for a in (wtap, mask, w1f, b1f, a1f, w2f, b2f))
    cost = pl.CostEstimate(
        flops=int(2 * kk * B * C * g["Lpad"] + 4 * B * C * Cr),
        transcendentals=0,
        bytes_accessed=int(nphase * B * C * g["Lin"] * elt
                           + B * C * g["Lpad"] * elt + B * C * 4 + weight_bytes))

    kern = functools.partial(_dw_se_kernel, ksize=ksize, stride=stride,
                             PW=g["PW"], Lpad=g["Lpad"],
                             inv_hw=1.0 / (g["oh"] * g["ow"]))

    dw_flat, gate = pl.pallas_call(
        kern,
        out_shape=(jax.ShapeDtypeStruct((B, C, g["Lpad"]), x.dtype),
                   jax.ShapeDtypeStruct((B, C, 1), jnp.float32)),
        grid_spec=pltpu.PrefetchScalarGridSpec(
            num_scalar_prefetch=0,
            grid=(B // bt,),
            in_specs=[
                pl.BlockSpec((nphase, bt, C, g["Lin"]), lambda i: (0, i, 0, 0)),
                pl.BlockSpec((kk, C, 1), lambda i: (0, 0, 0)),       # taps (resident)
                pl.BlockSpec((1, 1, g["Lpad"]), lambda i: (0, 0, 0)),  # valid-lane mask
                pl.BlockSpec((C, Cr), lambda i: (0, 0)),             # SE w1
                pl.BlockSpec((1, Cr), lambda i: (0, 0)),             # SE b1
                pl.BlockSpec((1, Cr), lambda i: (0, 0)),             # SE PReLU alpha
                pl.BlockSpec((Cr, C), lambda i: (0, 0)),             # SE w2
                pl.BlockSpec((1, C), lambda i: (0, 0)),              # SE b2
            ],
            out_specs=(
                pl.BlockSpec((bt, C, g["Lpad"]), lambda i: (i, 0, 0)),
                pl.BlockSpec((bt, C, 1), lambda i: (i, 0, 0)),
            ),
        ),
        compiler_params=pltpu.CompilerParams(
            dimension_semantics=("parallel",),
            vmem_limit_bytes=budget),
        cost_estimate=cost,
    )(xph, wtap, mask, w1f, b1f, a1f, w2f, b2f)

    return dw_flat, gate, g


# --------------------------------------------------------------------------- #
# Kernel B: SE gate + pointwise conv (1x1) + BatchNorm affine + PReLU, fused
# --------------------------------------------------------------------------- #
def _pw_bn_prelu_kernel(x_ref, gate_ref, w_ref, scale_ref, shift_ref,
                        alpha_ref, o_ref, *, bf16_mxu):
    # x_ref: (bt, C, Lpad); gate_ref: (bt, C, 1) f32; w_ref: (Cout, C) f32;
    # scale/shift/alpha: (Cout, 1) f32; o_ref: (bt, Cout, Lpad).
    w = w_ref[...]
    for b in range(o_ref.shape[0]):                    # static unroll (batch tile <= 8)
        xb = x_ref[b].astype(jnp.float32) * gate_ref[b]          # SE gate fused in
        if bf16_mxu:
            z = jnp.dot(w.astype(jnp.bfloat16), xb.astype(jnp.bfloat16),
                        preferred_element_type=jnp.float32)
        else:
            z = jnp.dot(w, xb, preferred_element_type=jnp.float32,
                        precision=_HIGHEST)
        z = z * scale_ref[...] + shift_ref[...]                  # BN affine
        z = jnp.where(z >= 0, z, alpha_ref[...] * z)             # PReLU
        o_ref[b] = z.astype(o_ref.dtype)


def pointwise_bn_prelu(dw_flat, gate, w_pw, bn_scale, bn_shift, alpha_out):
    B, C, Lpad = dw_flat.shape
    Cout = w_pw.shape[0]
    elt = dw_flat.dtype.itemsize

    w_mat = w_pw.reshape(Cout, C).astype(jnp.float32)
    scale2 = bn_scale.reshape(Cout, 1).astype(jnp.float32)
    shift2 = bn_shift.reshape(Cout, 1).astype(jnp.float32)
    alpha2 = alpha_out.reshape(Cout, 1).astype(jnp.float32)

    budget = _vmem_budget_bytes()
    per_b = (2 * (C + Cout) * Lpad * elt      # double-buffered in/out
             + (C + Cout) * Lpad * 4          # f32 working copies
             + 2 * C * 4)
    bt = _pick_batch_tile(B, per_b, budget)

    bf16_mxu = dw_flat.dtype == jnp.bfloat16
    cost = pl.CostEstimate(
        flops=int(2 * B * Cout * C * Lpad + 3 * B * Cout * Lpad),
        transcendentals=0,
        bytes_accessed=int(B * (C + Cout) * Lpad * elt + Cout * C * 4 + B * C * 4))

    out_flat = pl.pallas_call(
        functools.partial(_pw_bn_prelu_kernel, bf16_mxu=bf16_mxu),
        out_shape=jax.ShapeDtypeStruct((B, Cout, Lpad), dw_flat.dtype),
        grid_spec=pltpu.PrefetchScalarGridSpec(
            num_scalar_prefetch=0,
            grid=(B // bt,),
            in_specs=[
                pl.BlockSpec((bt, C, Lpad), lambda i: (i, 0, 0)),
                pl.BlockSpec((bt, C, 1), lambda i: (i, 0, 0)),
                pl.BlockSpec((Cout, C), lambda i: (0, 0)),
                pl.BlockSpec((Cout, 1), lambda i: (0, 0)),
                pl.BlockSpec((Cout, 1), lambda i: (0, 0)),
                pl.BlockSpec((Cout, 1), lambda i: (0, 0)),
            ],
            out_specs=pl.BlockSpec((bt, Cout, Lpad), lambda i: (i, 0, 0)),
        ),
        compiler_params=pltpu.CompilerParams(
            dimension_semantics=("parallel",),
            vmem_limit_bytes=budget),
        cost_estimate=cost,
    )(dw_flat, gate, w_mat, scale2, shift2, alpha2)
    return out_flat


# --------------------------------------------------------------------------- #
# DSConvSE forward + pure-JAX reference
# --------------------------------------------------------------------------- #
def dsconv_se_forward(x, params, *, ksize, stride):
    """Forward pass of DSConvSE (inference). x: (B, C_in, H, W)."""
    B = x.shape[0]
    dw_flat, gate, g = depthwise_se(
        x, params["w_dw"], params["w1"], params["b1"], params["alpha1"],
        params["w2"], params["b2"], ksize=ksize, stride=stride)

    # BatchNorm (inference, running stats, eps=1e-3) folded into a per-channel affine.
    # TODO(synk): training-mode batch statistics are not implemented.
    inv_std = jax.lax.rsqrt(params["bn_var"] + 1e-3)
    scale = params["bn_gamma"] * inv_std
    shift = params["bn_beta"] - params["bn_mean"] * scale

    out_flat = pointwise_bn_prelu(dw_flat, gate, params["w_pw"],
                                  scale, shift, params["alpha_out"])

    # Single layout conversion back to NCHW at the very end.
    Cout = params["w_pw"].shape[0]
    oh, ow, PW = g["oh"], g["ow"], g["PW"]
    out = out_flat[:, :, :oh * PW].reshape(B, Cout, oh, PW)[:, :, :, :ow]
    return out


def dsconv_se_reference(x, params, *, ksize, stride):
    """Pure-JAX reference matching the PyTorch DSConvSE.forward (eval mode)."""
    pad = (ksize - 1) // 2
    dw = jax.lax.conv_general_dilated(
        x, params["w_dw"], window_strides=(stride, stride),
        padding=[(pad, pad), (pad, pad)],
        dimension_numbers=("NCHW", "OIHW", "NCHW"),
        feature_group_count=x.shape[1], precision=_HIGHEST)

    y = jnp.mean(dw, axis=(2, 3))
    y = jnp.dot(y, params["w1"], precision=_HIGHEST) + params["b1"]
    y = jnp.where(y >= 0, y, params["alpha1"] * y)
    y = jnp.dot(y, params["w2"], precision=_HIGHEST) + params["b2"]
    se = dw * y[:, :, None, None]

    pw = jax.lax.conv_general_dilated(
        se, params["w_pw"], window_strides=(1, 1), padding="VALID",
        dimension_numbers=("NCHW", "OIHW", "NCHW"), precision=_HIGHEST)

    inv_std = jax.lax.rsqrt(params["bn_var"] + 1e-3)
    z = ((pw - params["bn_mean"][None, :, None, None])
         * (params["bn_gamma"] * inv_std)[None, :, None, None]
         + params["bn_beta"][None, :, None, None])
    return jnp.where(z >= 0, z, params["alpha_out"][None, :, None, None] * z)


def _make_params(key, c_in, c_out, reduction, ksize):
    # TODO(synk): the SE variant with reduction=1 (single Linear + PReLU) is not implemented.
    cr = c_in // reduction
    ks = jax.random.split(key, 10)
    f32 = jnp.float32
    return dict(
        w_dw=jax.random.normal(ks[0], (c_in, 1, ksize, ksize), f32) * 0.3,
        w1=jax.random.normal(ks[1], (c_in, cr), f32) * 0.5,        # (in, out)
        b1=jax.random.normal(ks[2], (cr,), f32) * 0.1,
        alpha1=jnp.full((cr,), 0.25, f32),                         # PReLU default
        w2=jax.random.normal(ks[3], (cr, c_in), f32) * 0.5,
        b2=jax.random.normal(ks[4], (c_in,), f32) * 0.1,
        w_pw=jax.random.normal(ks[5], (c_out, c_in, 1, 1), f32) * 0.4,
        bn_gamma=1.0 + 0.1 * jax.random.normal(ks[6], (c_out,), f32),
        bn_beta=0.1 * jax.random.normal(ks[7], (c_out,), f32),
        bn_mean=0.1 * jax.random.normal(ks[8], (c_out,), f32),
        bn_var=jax.random.uniform(ks[9], (c_out,), f32, 0.5, 1.5),
        alpha_out=jnp.full((c_out,), 0.25, f32),
    )


if __name__ == "__main__":
    root = jax.random.PRNGKey(0)

    configs = [
        # (B, C_in, C_out, H, W, ksize, stride)
        (2, 4, 8, 16, 16, 3, 1),
        (3, 6, 4, 9, 9, 3, 2),     # exercises the folded stride-2 phase path
    ]

    for idx, (B, Cin, Cout, H, W, k, s) in enumerate(configs):
        kp, kx = jax.random.split(jax.random.fold_in(root, idx))
        params = _make_params(kp, Cin, Cout, 2, k)
        x = jax.random.normal(kx, (B, Cin, H, W), jnp.float32)

        fwd = jax.jit(functools.partial(dsconv_se_forward, ksize=k, stride=s))
        out = jax.block_until_ready(fwd(x, params))
        ref = dsconv_se_reference(x, params, ksize=k, stride=s)

        assert out.shape == ref.shape, (out.shape, ref.shape)
        assert jnp.allclose(out, ref, atol=1e-4, rtol=1e-4), (
            f"config {idx}: max abs err "
            f"{float(jnp.max(jnp.abs(out - ref))):.3e}")

    # bf16 activation storage (halves HBM traffic on a bandwidth-bound op);
    # accumulation stays f32, 1x1-conv matmul runs on the native bf16 MXU path.
    B, Cin, Cout, H, W, k, s = configs[0]
    kp, kx = jax.random.split(jax.random.fold_in(root, 0))
    params = _make_params(kp, Cin, Cout, 2, k)
    x = jax.random.normal(kx, (B, Cin, H, W), jnp.float32)
    fwd = jax.jit(functools.partial(dsconv_se_forward, ksize=k, stride=s))
    out_bf16 = jax.block_until_ready(fwd(x.astype(jnp.bfloat16), params))
    ref = dsconv_se_reference(x, params, ksize=k, stride=s)
    assert out_bf16.shape == ref.shape
    assert jnp.allclose(out_bf16.astype(jnp.float32), ref, atol=0.1, rtol=0.1)

    print("KERNEL_OK")
</pallas_src>

<mosaic_0001>
module attributes {stable_mosaic.version = 11 : i64} {
  func.func @_dw_se_kernel(%arg0: i32, %arg1: memref<1x2x4x422xf32, #tpu.memory_space<vmem>>, %arg2: memref<9x4x1xf32, #tpu.memory_space<vmem>>, %arg3: memref<1x1x384xf32, #tpu.memory_space<vmem>>, %arg4: memref<4x2xf32, #tpu.memory_space<vmem>>, %arg5: memref<1x2xf32, #tpu.memory_space<vmem>>, %arg6: memref<1x2xf32, #tpu.memory_space<vmem>>, %arg7: memref<2x4xf32, #tpu.memory_space<vmem>>, %arg8: memref<1x4xf32, #tpu.memory_space<vmem>>, %arg9: memref<2x4x384xf32, #tpu.memory_space<vmem>>, %arg10: memref<2x4x1xf32, #tpu.memory_space<vmem>>) attributes {dimension_semantics = [#tpu.dimension_semantics<parallel>], iteration_bounds = array<i64: 1>, scalar_prefetch = 0 : i64, scratch_operands = 0 : i64, tpu.core_type = #tpu.core_type<tc>, window_params = [{transform_indices = @transform_0, window_bounds = array<i64: 1, 2, 4, 422>}, {pipeline_mode = #tpu.pipeline_mode<synchronous>, transform_indices = @transform_1, window_bounds = array<i64: 9, 4, 1>}, {pipeline_mode = #tpu.pipeline_mode<synchronous>, transform_indices = @transform_2, window_bounds = array<i64: 1, 1, 384>}, {pipeline_mode = #tpu.pipeline_mode<synchronous>, transform_indices = @transform_3, window_bounds = array<i64: 4, 2>}, {pipeline_mode = #tpu.pipeline_mode<synchronous>, transform_indices = @transform_4, window_bounds = array<i64: 1, 2>}, {pipeline_mode = #tpu.pipeline_mode<synchronous>, transform_indices = @transform_5, window_bounds = array<i64: 1, 2>}, {pipeline_mode = #tpu.pipeline_mode<synchronous>, transform_indices = @transform_6, window_bounds = array<i64: 2, 4>}, {pipeline_mode = #tpu.pipeline_mode<synchronous>, transform_indices = @transform_7, window_bounds = array<i64: 1, 4>}, {transform_indices = @transform_8, window_bounds = array<i64: 2, 4, 384>}, {transform_indices = @transform_9, window_bounds = array<i64: 2, 4, 1>}]} {
    %cst = arith.constant 0.000000e+00 : f32
    %0 = vector.broadcast %cst : f32 to vector<2x4x384xf32>
    %c0 = arith.constant 0 : index
    %c0_0 = arith.constant 0 : index
    %c0_1 = arith.constant 0 : index
    %c0_2 = arith.constant 0 : index
    %1 = vector.load %arg1[%c0, %c0_0, %c0_1, %c0_2] : memref<1x2x4x422xf32, #tpu.memory_space<vmem>>, vector<1x2x4x384xf32>
    %2 = vector.shape_cast %1 : vector<1x2x4x384xf32> to vector<2x4x384xf32>
    %c0_3 = arith.constant 0 : index
    %c0_4 = arith.constant 0 : index
    %c0_5 = arith.constant 0 : index
    %3 = vector.load %arg2[%c0_3, %c0_4, %c0_5] : memref<9x4x1xf32, #tpu.memory_space<vmem>>, vector<1x4x1xf32>
    %4 = vector.shape_cast %3 : vector<1x4x1xf32> to vector<4x1xf32>
    %5 = vector.shape_cast %4 : vector<4x1xf32> to vector<1x4x1xf32>
    %6 = vector.broadcast %5 : vector<1x4x1xf32> to vector<2x4x384xf32>
    %7 = arith.mulf %2, %6 : vector<2x4x384xf32>
    %8 = arith.addf %0, %7 : vector<2x4x384xf32>
    %c0_6 = arith.constant 0 : index
    %c0_7 = arith.constant 0 : index
    %c0_8 = arith.constant 0 : index
    %c1 = arith.constant 1 : index
    %9 = vector.load %arg1[%c0_6, %c0_7, %c0_8, %c1] : memref<1x2x4x422xf32, #tpu.memory_space<vmem>>, vector<1x2x4x384xf32>
    %10 = vector.shape_cast %9 : vector<1x2x4x384xf32> to vector<2x4x384xf32>
    %c1_9 = arith.constant 1 : index
    %c0_10 = arith.constant 0 : index
    %c0_11 = arith.constant 0 : index
    %11 = vector.load %arg2[%c1_9, %c0_10, %c0_11] : memref<9x4x1xf32, #tpu.memory_space<vmem>>, vector<1x4x1xf32>
    %12 = vector.shape_cast %11 : vector<1x4x1xf32> to vector<4x1xf32>
    %13 = vector.shape_cast %12 : vector<4x1xf32> to vector<1x4x1xf32>
    %14 = vector.broadcast %13 : vector<1x4x1xf32> to vector<2x4x384xf32>
    %15 = arith.mulf %10, %14 : vector<2x4x384xf32>
    %16 = arith.addf %8, %15 : vector<2x4x384xf32>
    %c0_12 = arith.constant 0 : index
    %c0_13 = arith.constant 0 : index
    %c0_14 = arith.constant 0 : index
    %c2 = arith.constant 2 : index
    %17 = vector.load %arg1[%c0_12, %c0_13, %c0_14, %c2] : memref<1x2x4x422xf32, #tpu.memory_space<vmem>>, vector<1x2x4x384xf32>
    %18 = vector.shape_cast %17 : vector<1x2x4x384xf32> to vector<2x4x384xf32>
    %c2_15 = arith.constant 2 : index
    %c0_16 = arith.constant 0 : index
    %c0_17 = arith.constant 0 : index
    %19 = vector.load %arg2[%c2_15, %c0_16, %c0_17] : memref<9x4x1xf32, #tpu.memory_space<vmem>>, vector<1x4x1xf32>
    %20 = vector.shape_cast %19 : vector<1x4x1xf32> to vector<4x1xf32>
    %21 = vector.shape_cast %20 : vector<4x1xf32> to vector<1x4x1xf32>
    %22 = vector.broadcast %21 : vector<1x4x1xf32> to vector<2x4x384xf32>
    %23 = arith.mulf %18, %22 : vector<2x4x384xf32>
    %24 = arith.addf %16, %23 : vector<2x4x384xf32>
    %c0_18 = arith.constant 0 : index
    %c0_19 = arith.constant 0 : index
    %c0_20 = arith.constant 0 : index
    %c18 = arith.constant 18 : index
    %25 = vector.load %arg1[%c0_18, %c0_19, %c0_20, %c18] : memref<1x2x4x422xf32, #tpu.memory_space<vmem>>, vector<1x2x4x384xf32>
    %26 = vector.shape_cast %25 : vector<1x2x4x384xf32> to vector<2x4x384xf32>
    %c3 = arith.constant 3 : index
    %c0_21 = arith.constant 0 : index
    %c0_22 = arith.constant 0 : index
    %27 = vector.load %arg2[%c3, %c0_21, %c0_22] : memref<9x4x1xf32, #tpu.memory_space<vmem>>, vector<1x4x1xf32>
    %28 = vector.shape_cast %27 : vector<1x4x1xf32> to vector<4x1xf32>
    %29 = vector.shape_cast %28 : vector<4x1xf32> to vector<1x4x1xf32>
    %30 = vector.broadcast %29 : vector<1x4x1xf32> to vector<2x4x384xf32>
    %31 = arith.mulf %26, %30 : vector<2x4x384xf32>
    %32 = arith.addf %24, %31 : vector<2x4x384xf32>
    %c0_23 = arith.constant 0 : index
    %c0_24 = arith.constant 0 : index
    %c0_25 = arith.constant 0 : index
    %c19 = arith.constant 19 : index
    %33 = vector.load %arg1[%c0_23, %c0_24, %c0_25, %c19] : memref<1x2x4x422xf32, #tpu.memory_space<vmem>>, vector<1x2x4x384xf32>
    %34 = vector.shape_cast %33 : vector<1x2x4x384xf32> to vector<2x4x384xf32>
    %c4 = arith.constant 4 : index
    %c0_26 = arith.constant 0 : index
    %c0_27 = arith.constant 0 : index
    %35 = vector.load %arg2[%c4, %c0_26, %c0_27] : memref<9x4x1xf32, #tpu.memory_space<vmem>>, vector<1x4x1xf32>
    %36 = vector.shape_cast %35 : vector<1x4x1xf32> to vector<4x1xf32>
    %37 = vector.shape_cast %36 : vector<4x1xf32> to vector<1x4x1xf32>
    %38 = vector.broadcast %37 : vector<1x4x1xf32> to vector<2x4x384xf32>
    %39 = arith.mulf %34, %38 : vector<2x4x384xf32>
    %40 = arith.addf %32, %39 : vector<2x4x384xf32>
    %c0_28 = arith.constant 0 : index
    %c0_29 = arith.constant 0 : index
    %c0_30 = arith.constant 0 : index
    %c20 = arith.constant 20 : index
    %41 = vector.load %arg1[%c0_28, %c0_29, %c0_30, %c20] : memref<1x2x4x422xf32, #tpu.memory_space<vmem>>, vector<1x2x4x384xf32>
    %42 = vector.shape_cast %41 : vector<1x2x4x384xf32> to vector<2x4x384xf32>
    %c5 = arith.constant 5 : index
    %c0_31 = arith.constant 0 : index
    %c0_32 = arith.constant 0 : index
    %43 = vector.load %arg2[%c5, %c0_31, %c0_32] : memref<9x4x1xf32, #tpu.memory_space<vmem>>, vector<1x4x1xf32>
    %44 = vector.shape_cast %43 : vector<1x4x1xf32> to vector<4x1xf32>
    %45 = vector.shape_cast %44 : vector<4x1xf32> to vector<1x4x1xf32>
    %46 = vector.broadcast %45 : vector<1x4x1xf32> to vector<2x4x384xf32>
    %47 = arith.mulf %42, %46 : vector<2x4x384xf32>
    %48 = arith.addf %40, %47 : vector<2x4x384xf32>
    %c0_33 = arith.constant 0 : index
    %c0_34 = arith.constant 0 : index
    %c0_35 = arith.constant 0 : index
    %c36 = arith.constant 36 : index
    %49 = vector.load %arg1[%c0_33, %c0_34, %c0_35, %c36] : memref<1x2x4x422xf32, #tpu.memory_space<vmem>>, vector<1x2x4x384xf32>
    %50 = vector.shape_cast %49 : vector<1x2x4x384xf32> to vector<2x4x384xf32>
    %c6 = arith.constant 6 : index
    %c0_36 = arith.constant 0 : index
    %c0_37 = arith.constant 0 : index
    %51 = vector.load %arg2[%c6, %c0_36, %c0_37] : memref<9x4x1xf32, #tpu.memory_space<vmem>>, vector<1x4x1xf32>
    %52 = vector.shape_cast %51 : vector<1x4x1xf32> to vector<4x1xf32>
    %53 = vector.shape_cast %52 : vector<4x1xf32> to vector<1x4x1xf32>
    %54 = vector.broadcast %53 : vector<1x4x1xf32> to vector<2x4x384xf32>
    %55 = arith.mulf %50, %54 : vector<2x4x384xf32>
    %56 = arith.addf %48, %55 : vector<2x4x384xf32>
    %c0_38 = arith.constant 0 : index
    %c0_39 = arith.constant 0 : index
    %c0_40 = arith.constant 0 : index
    %c37 = arith.constant 37 : index
    %57 = vector.load %arg1[%c0_38, %c0_39, %c0_40, %c37] : memref<1x2x4x422xf32, #tpu.memory_space<vmem>>, vector<1x2x4x384xf32>
    %58 = vector.shape_cast %57 : vector<1x2x4x384xf32> to vector<2x4x384xf32>
    %c7 = arith.constant 7 : index
    %c0_41 = arith.constant 0 : index
    %c0_42 = arith.constant 0 : index
    %59 = vector.load %arg2[%c7, %c0_41, %c0_42] : memref<9x4x1xf32, #tpu.memory_space<vmem>>, vector<1x4x1xf32>
    %60 = vector.shape_cast %59 : vector<1x4x1xf32> to vector<4x1xf32>
    %61 = vector.shape_cast %60 : vector<4x1xf32> to vector<1x4x1xf32>
    %62 = vector.broadcast %61 : vector<1x4x1xf32> to vector<2x4x384xf32>
    %63 = arith.mulf %58, %62 : vector<2x4x384xf32>
    %64 = arith.addf %56, %63 : vector<2x4x384xf32>
    %c0_43 = arith.constant 0 : index
    %c0_44 = arith.constant 0 : index
    %c0_45 = arith.constant 0 : index
    %c38 = arith.constant 38 : index
    %65 = vector.load %arg1[%c0_43, %c0_44, %c0_45, %c38] : memref<1x2x4x422xf32, #tpu.memory_space<vmem>>, vector<1x2x4x384xf32>
    %66 = vector.shape_cast %65 : vector<1x2x4x384xf32> to vector<2x4x384xf32>
    %c8 = arith.constant 8 : index
    %c0_46 = arith.constant 0 : index
    %c0_47 = arith.constant 0 : index
    %67 = vector.load %arg2[%c8, %c0_46, %c0_47] : memref<9x4x1xf32, #tpu.memory_space<vmem>>, vector<1x4x1xf32>
    %68 = vector.shape_cast %67 : vector<1x4x1xf32> to vector<4x1xf32>
    %69 = vector.shape_cast %68 : vector<4x1xf32> to vector<1x4x1xf32>
    %70 = vector.broadcast %69 : vector<1x4x1xf32> to vector<2x4x384xf32>
    %71 = arith.mulf %66, %70 : vector<2x4x384xf32>
    %72 = arith.addf %64, %71 : vector<2x4x384xf32>
    %c0_48 = arith.constant 0 : index
    %c0_49 = arith.constant 0 : index
    %c0_50 = arith.constant 0 : index
    %73 = vector.load %arg9[%c0_48, %c0_49, %c0_50] : memref<2x4x384xf32, #tpu.memory_space<vmem>>, vector<2x4x384xf32>
    tpu.vector_store %arg9[%c0_48, %c0_49, %c0_50], %72 {strides = array<i32>} : memref<2x4x384xf32, #tpu.memory_space<vmem>>, vector<2x4x384xf32>,
    %c0_51 = arith.constant 0 : index
    %c0_52 = arith.constant 0 : index
    %c0_53 = arith.constant 0 : index
    %74 = vector.load %arg3[%c0_51, %c0_52, %c0_53] : memref<1x1x384xf32, #tpu.memory_space<vmem>>, vector<1x1x384xf32>
    %75 = vector.broadcast %74 : vector<1x1x384xf32> to vector<2x4x384xf32>
    %76 = arith.mulf %72, %75 : vector<2x4x384xf32>
    %cst_54 = arith.constant dense<0.000000e+00> : vector<2x4xf32>
    %77 = vector.multi_reduction <add>, %76, %cst_54 [2] : vector<2x4x384xf32> to vector<2x4xf32>
    %cst_55 = arith.constant 3.906250e-03 : f32
    %78 = vector.broadcast %cst_55 : f32 to vector<2x4xf32>
    %79 = arith.mulf %77, %78 : vector<2x4xf32>
    %c0_56 = arith.constant 0 : index
    %c0_57 = arith.constant 0 : index
    %80 = vector.load %arg4[%c0_56, %c0_57] : memref<4x2xf32, #tpu.memory_space<vmem>>, vector<4x2xf32>
    %cst_58 = arith.constant dense<0.000000e+00> : vector<2x2xf32>
    %81 = tpu.matmul %79, %80, %cst_58 {dimension_numbers = #tpu.dot_dimension_numbers<[1], [0], [0], [1], [0, 0, 1, 1], [], []>, precision = #tpu.contract_precision<fp32>} : vector<2x4xf32>, vector<4x2xf32>, vector<2x2xf32> -> vector<2x2xf32>
    %c0_59 = arith.constant 0 : index
    %c0_60 = arith.constant 0 : index
    %82 = vector.load %arg5[%c0_59, %c0_60] : memref<1x2xf32, #tpu.memory_space<vmem>>, vector<1x2xf32>
    %83 = vector.broadcast %82 : vector<1x2xf32> to vector<2x2xf32>
    %84 = arith.addf %81, %83 : vector<2x2xf32>
    %cst_61 = arith.constant 0.000000e+00 : f32
    %85 = vector.broadcast %cst_61 : f32 to vector<2x2xf32>
    %86 = arith.cmpf oge, %84, %85 : vector<2x2xf32>
    %c0_62 = arith.constant 0 : index
    %c0_63 = arith.constant 0 : index
    %87 = vector.load %arg6[%c0_62, %c0_63] : memref<1x2xf32, #tpu.memory_space<vmem>>, vector<1x2xf32>
    %88 = vector.broadcast %87 : vector<1x2xf32> to vector<2x2xf32>
    %89 = arith.mulf %88, %84 : vector<2x2xf32>
    %90 = arith.select %86, %84, %89 : vector<2x2xi1>, vector<2x2xf32>
    %c0_64 = arith.constant 0 : index
    %c0_65 = arith.constant 0 : index
    %91 = vector.load %arg7[%c0_64, %c0_65] : memref<2x4xf32, #tpu.memory_space<vmem>>, vector<2x4xf32>
    %cst_66 = arith.constant dense<0.000000e+00> : vector<2x4xf32>
    %92 = tpu.matmul %90, %91, %cst_66 {dimension_numbers = #tpu.dot_dimension_numbers<[1], [0], [0], [1], [0, 0, 1, 1], [], []>, precision = #tpu.contract_precision<fp32>} : vector<2x2xf32>, vector<2x4xf32>, vector<2x4xf32> -> vector<2x4xf32>
    %c0_67 = arith.constant 0 : index
    %c0_68 = arith.constant 0 : index
    %93 = vector.load %arg8[%c0_67, %c0_68] : memref<1x4xf32, #tpu.memory_space<vmem>>, vector<1x4xf32>
    %94 = vector.broadcast %93 : vector<1x4xf32> to vector<2x4xf32>
    %95 = arith.addf %92, %94 : vector<2x4xf32>
    %96 = vector.shape_cast %95 : vector<2x4xf32> to vector<2x4x1xf32>
    %c0_69 = arith.constant 0 : index
    %c0_70 = arith.constant 0 : index
    %c0_71 = arith.constant 0 : index
    %97 = vector.load %arg10[%c0_69, %c0_70, %c0_71] : memref<2x4x1xf32, #tpu.memory_space<vmem>>, vector<2x4x1xf32>
    tpu.vector_store %arg10[%c0_69, %c0_70, %c0_71], %96 {strides = array<i32>} : memref<2x4x1xf32, #tpu.memory_space<vmem>>, vector<2x4x1xf32>,
    return
  }
  func.func @transform_0(%arg0: i32) -> (i32, i32, i32, i32) {
    %c0_i32 = arith.constant 0 : i32
    %c0_i32_0 = arith.constant 0 : i32
    %c0_i32_1 = arith.constant 0 : i32
    %c0_i32_2 = arith.constant 0 : i32
    return %c0_i32, %arg0, %c0_i32_0, %c0_i32_1 : i32, i32, i32, i32
  }
  func.func @transform_1(%arg0: i32) -> (i32, i32, i32) {
    %c0_i32 = arith.constant 0 : i32
    %c0_i32_0 = arith.constant 0 : i32
    %c0_i32_1 = arith.constant 0 : i32
    %c0_i32_2 = arith.constant 0 : i32
    return %c0_i32, %c0_i32_0, %c0_i32_1 : i32, i32, i32
  }
  func.func @transform_2(%arg0: i32) -> (i32, i32, i32) {
    %c0_i32 = arith.constant 0 : i32
    %c0_i32_0 = arith.constant 0 : i32
    %c0_i32_1 = arith.constant 0 : i32
    %c0_i32_2 = arith.constant 0 : i32
    return %c0_i32, %c0_i32_0, %c0_i32_1 : i32, i32, i32
  }
  func.func @transform_3(%arg0: i32) -> (i32, i32) {
    %c0_i32 = arith.constant 0 : i32
    %c0_i32_0 = arith.constant 0 : i32
    %c0_i32_1 = arith.constant 0 : i32
    return %c0_i32, %c0_i32_0 : i32, i32
  }
  func.func @transform_4(%arg0: i32) -> (i32, i32) {
    %c0_i32 = arith.constant 0 : i32
    %c0_i32_0 = arith.constant 0 : i32
    %c0_i32_1 = arith.constant 0 : i32
    return %c0_i32, %c0_i32_0 : i32, i32
  }
  func.func @transform_5(%arg0: i32) -> (i32, i32) {
    %c0_i32 = arith.constant 0 : i32
    %c0_i32_0 = arith.constant 0 : i32
    %c0_i32_1 = arith.constant 0 : i32
    return %c0_i32, %c0_i32_0 : i32, i32
  }
  func.func @transform_6(%arg0: i32) -> (i32, i32) {
    %c0_i32 = arith.constant 0 : i32
    %c0_i32_0 = arith.constant 0 : i32
    %c0_i32_1 = arith.constant 0 : i32
    return %c0_i32, %c0_i32_0 : i32, i32
  }
  func.func @transform_7(%arg0: i32) -> (i32, i32) {
    %c0_i32 = arith.constant 0 : i32
    %c0_i32_0 = arith.constant 0 : i32
    %c0_i32_1 = arith.constant 0 : i32
    return %c0_i32, %c0_i32_0 : i32, i32
  }
  func.func @transform_8(%arg0: i32) -> (i32, i32, i32) {
    %c0_i32 = arith.constant 0 : i32
    %c0_i32_0 = arith.constant 0 : i32
    %c0_i32_1 = arith.constant 0 : i32
    return %arg0, %c0_i32, %c0_i32_0 : i32, i32, i32
  }
  func.func @transform_9(%arg0: i32) -> (i32, i32, i32) {
    %c0_i32 = arith.constant 0 : i32
    %c0_i32_0 = arith.constant 0 : i32
    %c0_i32_1 = arith.constant 0 : i32
    return %arg0, %c0_i32, %c0_i32_0 : i32, i32, i32
  }
}

module attributes {stable_mosaic.version = 11 : i64} {
  func.func @_pw_bn_prelu_kernel(%arg0: i32, %arg1: memref<2x4x384xf32, #tpu.memory_space<vmem>>, %arg2: memref<2x4x1xf32, #tpu.memory_space<vmem>>, %arg3: memref<8x4xf32, #tpu.memory_space<vmem>>, %arg4: memref<8x1xf32, #tpu.memory_space<vmem>>, %arg5: memref<8x1xf32, #tpu.memory_space<vmem>>, %arg6: memref<8x1xf32, #tpu.memory_space<vmem>>, %arg7: memref<2x8x384xf32, #tpu.memory_space<vmem>>) attributes {dimension_semantics = [#tpu.dimension_semantics<parallel>], iteration_bounds = array<i64: 1>, scalar_prefetch = 0 : i64, scratch_operands = 0 : i64, tpu.core_type = #tpu.core_type<tc>, window_params = [{transform_indices = @transform_0, window_bounds = array<i64: 2, 4, 384>}, {transform_indices = @transform_1, window_bounds = array<i64: 2, 4, 1>}, {pipeline_mode = #tpu.pipeline_mode<synchronous>, transform_indices = @transform_2, window_bounds = array<i64: 8, 4>}, {pipeline_mode = #tpu.pipeline_mode<synchronous>, transform_indices = @transform_3, window_bounds = array<i64: 8, 1>}, {pipeline_mode = #tpu.pipeline_mode<synchronous>, transform_indices = @transform_4, window_bounds = array<i64: 8, 1>}, {pipeline_mode = #tpu.pipeline_mode<synchronous>, transform_indices = @transform_5, window_bounds = array<i64: 8, 1>}, {transform_indices = @transform_6, window_bounds = array<i64: 2, 8, 384>}]} {
    %c0 = arith.constant 0 : index
    %c0_0 = arith.constant 0 : index
    %0 = vector.load %arg3[%c0, %c0_0] : memref<8x4xf32, #tpu.memory_space<vmem>>, vector<8x4xf32>
    %c0_1 = arith.constant 0 : index
    %c0_2 = arith.constant 0 : index
    %c0_3 = arith.constant 0 : index
    %1 = vector.load %arg1[%c0_1, %c0_2, %c0_3] : memref<2x4x384xf32, #tpu.memory_space<vmem>>, vector<1x4x384xf32>
    %2 = vector.shape_cast %1 : vector<1x4x384xf32> to vector<4x384xf32>
    %c0_4 = arith.constant 0 : index
    %c0_5 = arith.constant 0 : index
    %c0_6 = arith.constant 0 : index
    %3 = vector.load %arg2[%c0_4, %c0_5, %c0_6] : memref<2x4x1xf32, #tpu.memory_space<vmem>>, vector<1x4x1xf32>
    %4 = vector.shape_cast %3 : vector<1x4x1xf32> to vector<4x1xf32>
    %5 = vector.broadcast %4 : vector<4x1xf32> to vector<4x384xf32>
    %6 = arith.mulf %2, %5 : vector<4x384xf32>
    %cst = arith.constant dense<0.000000e+00> : vector<8x384xf32>
    %7 = tpu.matmul %0, %6, %cst {dimension_numbers = #tpu.dot_dimension_numbers<[1], [0], [0], [1], [0, 0, 1, 1], [], []>, precision = #tpu.contract_precision<fp32>} : vector<8x4xf32>, vector<4x384xf32>, vector<8x384xf32> -> vector<8x384xf32>
    %c0_7 = arith.constant 0 : index
    %c0_8 = arith.constant 0 : index
    %8 = vector.load %arg4[%c0_7, %c0_8] : memref<8x1xf32, #tpu.memory_space<vmem>>, vector<8x1xf32>
    %9 = vector.broadcast %8 : vector<8x1xf32> to vector<8x384xf32>
    %10 = arith.mulf %7, %9 : vector<8x384xf32>
    %c0_9 = arith.constant 0 : index
    %c0_10 = arith.constant 0 : index
    %11 = vector.load %arg5[%c0_9, %c0_10] : memref<8x1xf32, #tpu.memory_space<vmem>>, vector<8x1xf32>
    %12 = vector.broadcast %11 : vector<8x1xf32> to vector<8x384xf32>
    %13 = arith.addf %10, %12 : vector<8x384xf32>
    %cst_11 = arith.constant 0.000000e+00 : f32
    %14 = vector.broadcast %cst_11 : f32 to vector<8x384xf32>
    %15 = arith.cmpf oge, %13, %14 : vector<8x384xf32>
    %c0_12 = arith.constant 0 : index
    %c0_13 = arith.constant 0 : index
    %16 = vector.load %arg6[%c0_12, %c0_13] : memref<8x1xf32, #tpu.memory_space<vmem>>, vector<8x1xf32>
    %17 = vector.broadcast %16 : vector<8x1xf32> to vector<8x384xf32>
    %18 = arith.mulf %17, %13 : vector<8x384xf32>
    %19 = arith.select %15, %13, %18 : vector<8x384xi1>, vector<8x384xf32>
    %c0_14 = arith.constant 0 : index
    %c0_15 = arith.constant 0 : index
    %c0_16 = arith.constant 0 : index
    %20 = vector.load %arg7[%c0_14, %c0_15, %c0_16] : memref<2x8x384xf32, #tpu.memory_space<vmem>>, vector<1x8x384xf32>
    %21 = vector.shape_cast %20 : vector<1x8x384xf32> to vector<8x384xf32>
    %22 = vector.shape_cast %19 : vector<8x384xf32> to vector<1x8x384xf32>
    tpu.vector_store %arg7[%c0_14, %c0_15, %c0_16], %22 {strides = array<i32>} : memref<2x8x384xf32, #tpu.memory_space<vmem>>, vector<1x8x384xf32>,
    %c1 = arith.constant 1 : index
    %c0_17 = arith.constant 0 : index
    %c0_18 = arith.constant 0 : index
    %23 = vector.load %arg1[%c1, %c0_17, %c0_18] : memref<2x4x384xf32, #tpu.memory_space<vmem>>, vector<1x4x384xf32>
    %24 = vector.shape_cast %23 : vector<1x4x384xf32> to vector<4x384xf32>
    %c1_19 = arith.constant 1 : index
    %c0_20 = arith.constant 0 : index
    %c0_21 = arith.constant 0 : index
    %25 = vector.load %arg2[%c1_19, %c0_20, %c0_21] : memref<2x4x1xf32, #tpu.memory_space<vmem>>, vector<1x4x1xf32>
    %26 = vector.shape_cast %25 : vector<1x4x1xf32> to vector<4x1xf32>
    %27 = vector.broadcast %26 : vector<4x1xf32> to vector<4x384xf32>
    %28 = arith.mulf %24, %27 : vector<4x384xf32>
    %cst_22 = arith.constant dense<0.000000e+00> : vector<8x384xf32>
    %29 = tpu.matmul %0, %28, %cst_22 {dimension_numbers = #tpu.dot_dimension_numbers<[1], [0], [0], [1], [0, 0, 1, 1], [], []>, precision = #tpu.contract_precision<fp32>} : vector<8x4xf32>, vector<4x384xf32>, vector<8x384xf32> -> vector<8x384xf32>
    %c0_23 = arith.constant 0 : index
    %c0_24 = arith.constant 0 : index
    %30 = vector.load %arg4[%c0_23, %c0_24] : memref<8x1xf32, #tpu.memory_space<vmem>>, vector<8x1xf32>
    %31 = vector.broadcast %30 : vector<8x1xf32> to vector<8x384xf32>
    %32 = arith.mulf %29, %31 : vector<8x384xf32>
    %c0_25 = arith.constant 0 : index
    %c0_26 = arith.constant 0 : index
    %33 = vector.load %arg5[%c0_25, %c0_26] : memref<8x1xf32, #tpu.memory_space<vmem>>, vector<8x1xf32>
    %34 = vector.broadcast %33 : vector<8x1xf32> to vector<8x384xf32>
    %35 = arith.addf %32, %34 : vector<8x384xf32>
    %cst_27 = arith.constant 0.000000e+00 : f32
    %36 = vector.broadcast %cst_27 : f32 to vector<8x384xf32>
    %37 = arith.cmpf oge, %35, %36 : vector<8x384xf32>
    %c0_28 = arith.constant 0 : index
    %c0_29 = arith.constant 0 : index
    %38 = vector.load %arg6[%c0_28, %c0_29] : memref<8x1xf32, #tpu.memory_space<vmem>>, vector<8x1xf32>
    %39 = vector.broadcast %38 : vector<8x1xf32> to vector<8x384xf32>
    %40 = arith.mulf %39, %35 : vector<8x384xf32>
    %41 = arith.select %37, %35, %40 : vector<8x384xi1>, vector<8x384xf32>
    %c1_30 = arith.constant 1 : index
    %c0_31 = arith.constant 0 : index
    %c0_32 = arith.constant 0 : index
    %42 = vector.load %arg7[%c1_30, %c0_31, %c0_32] : memref<2x8x384xf32, #tpu.memory_space<vmem>>, vector<1x8x384xf32>
    %43 = vector.shape_cast %42 : vector<1x8x384xf32> to vector<8x384xf32>
    %44 = vector.shape_cast %41 : vector<8x384xf32> to vector<1x8x384xf32>
    tpu.vector_store %arg7[%c1_30, %c0_31, %c0_32], %44 {strides = array<i32>} : memref<2x8x384xf32, #tpu.memory_space<vmem>>, vector<1x8x384xf32>,
    return
  }
  func.func @transform_0(%arg0: i32) -> (i32, i32, i32) {
    %c0_i32 = arith.constant 0 : i32
    %c0_i32_0 = arith.constant 0 : i32
    %c0_i32_1 = arith.constant 0 : i32
    return %arg0, %c0_i32, %c0_i32_0 : i32, i32, i32
  }
  func.func @transform_1(%arg0: i32) -> (i32, i32, i32) {
    %c0_i32 = arith.constant 0 : i32
    %c0_i32_0 = arith.constant 0 : i32
    %c0_i32_1 = arith.constant 0 : i32
    return %arg0, %c0_i32, %c0_i32_0 : i32, i32, i32
  }
  func.func @transform_2(%arg0: i32) -> (i32, i32) {
    %c0_i32 = arith.constant 0 : i32
    %c0_i32_0 = arith.constant 0 : i32
    %c0_i32_1 = arith.constant 0 : i32
    return %c0_i32, %c0_i32_0 : i32, i32
  }
  func.func @transform_3(%arg0: i32) -> (i32, i32) {
    %c0_i32 = arith.constant 0 : i32
    %c0_i32_0 = arith.constant 0 : i32
    %c0_i32_1 = arith.constant 0 : i32
    return %c0_i32, %c0_i32_0 : i32, i32
  }
  func.func @transform_4(%arg0: i32) -> (i32, i32) {
    %c0_i32 = arith.constant 0 : i32
    %c0_i32_0 = arith.constant 0 : i32
    %c0_i32_1 = arith.constant 0 : i32
    return %c0_i32, %c0_i32_0 : i32, i32
  }
  func.func @transform_5(%arg0: i32) -> (i32, i32) {
    %c0_i32 = arith.constant 0 : i32
    %c0_i32_0 = arith.constant 0 : i32
    %c0_i32_1 = arith.constant 0 : i32
    return %c0_i32, %c0_i32_0 : i32, i32
  }
  func.func @transform_6(%arg0: i32) -> (i32, i32, i32) {
    %c0_i32 = arith.constant 0 : i32
    %c0_i32_0 = arith.constant 0 : i32
    %c0_i32_1 = arith.constant 0 : i32
    return %arg0, %c0_i32, %c0_i32_0 : i32, i32, i32
  }
}

</mosaic_0001>

<llo_original>
// kernel: dsconv_se_forward.3
$region0: #{dsconv_se_forward.3}
  #allocation0 [shape = 'u32[]', space=smem, size = 0x4, offset = 0x4, fixed_abs, tag = 'smem constant byte address 0x4 - core index']
  #allocation1 [shape = 'u32[72,128]{1,0:T(1,128)}', space=vmem, size = 0x9000, scoped, tag = 'internal scratch']
  %s0 = inlined_call_operand.vmem [shape: f32[2,4,384], index: 0, kind: input, shape index: {}]
  %s1 = inlined_call_operand.vmem [shape: f32[2,4,1], index: 1, kind: input, shape index: {}]
  %s2 = inlined_call_operand.vmem [shape: f32[8,4], index: 2, kind: input, shape index: {}]
  %s3 = inlined_call_operand.vmem [shape: f32[8,1], index: 3, kind: input, shape index: {}]
  %s4 = inlined_call_operand.vmem [shape: f32[8,1], index: 4, kind: input, shape index: {}]
  %s5 = inlined_call_operand.vmem [shape: f32[8,1], index: 5, kind: input, shape index: {}]
  %s6 = inlined_call_operand.vmem [shape: f32[2,8,384], index: 6, kind: output, shape index: {}]
  %s7 = sld [smem:[#allocation0]]
  $region34: #{dsconv_se_forward.3} parent=0
    _
  %s9 = ssub.s32 1, %s7
  %s10 = scalar_select 0, %s9, %s7
  // Predicated region
  $region2: #{dsconv_se_forward.3} parent=0 // pred_check
    _
  $region3: #{dsconv_se_forward.3} parent=0 // pred_check_branch
    %12 = sbr.rel (0) target = $region5
  $region4: #{dsconv_se_forward.3} parent=0 // pred_region
    _
  $region5: #{dsconv_se_forward.3} parent=0 // pred_fallthru
    _
  // Predicated region
  $region6: #{dsconv_se_forward.3} parent=0 // pred_check
    _
  $region7: #{dsconv_se_forward.3} parent=0 // pred_check_branch
    %14 = sbr.rel (0) target = $region9
  $region8: #{dsconv_se_forward.3} parent=0 // pred_region
    _
  $region9: #{dsconv_se_forward.3} parent=0 // pred_fallthru
    _
  // Predicated region
  $region10: #{dsconv_se_forward.3} parent=0 // pred_check
    _
  $region11: #{dsconv_se_forward.3} parent=0 // pred_check_branch
    %16 = sbr.rel (0) target = $region13
  $region12: #{dsconv_se_forward.3} parent=0 // pred_region
    _
  $region13: #{dsconv_se_forward.3} parent=0 // pred_fallthru
    _
  // Predicated region
  $region14: #{dsconv_se_forward.3} parent=0 // pred_check
    _
  $region15: #{dsconv_se_forward.3} parent=0 // pred_check_branch
    %18 = sbr.rel (0) target = $region17
  $region16: #{dsconv_se_forward.3} parent=0 // pred_region
    _
  $region17: #{dsconv_se_forward.3} parent=0 // pred_fallthru
    _
  // Predicated region
  $region18: #{dsconv_se_forward.3} parent=0 // pred_check
    _
  $region19: #{dsconv_se_forward.3} parent=0 // pred_check_branch
    %20 = sbr.rel (0) target = $region21
  $region20: #{dsconv_se_forward.3} parent=0 // pred_region
    _
  $region21: #{dsconv_se_forward.3} parent=0 // pred_fallthru
    _
  // Predicated region
  $region22: #{dsconv_se_forward.3} parent=0 // pred_check
    _
  $region23: #{dsconv_se_forward.3} parent=0 // pred_check_branch
    %22 = sbr.rel (0) target = $region25
  $region24: #{dsconv_se_forward.3} parent=0 // pred_region
    _
  $region25: #{dsconv_se_forward.3} parent=0 // pred_fallthru
    _
  %v23 = vld [vmem:[%s2] sm:$0xff]
  %v24 = vld [vmem:[%s0] sm:$0xff]
  %v25 = vld [vmem:[%s0 + $0x8] sm:$0xf]
  %v26 = vld [vmem:[%s1] sm:$0xf]
  %28 = vset.pattern.permute.xlu0 0
  %29 = vperm.xlu0 %28, %v26
  %v30 = vpop.permute.xlu0 %29
  %v32 = vunpack.c.l.s4 839922192
  %v33 = vunpack.c.0.s8 %v32
  %v34 = vperm.slane %v30, %v33
  %v36 = vmul.f32 %v24, %v34
  %v37 = vmul.f32 %v25, %v34
  %40 = vst [vmem:[#allocation1] ss:$2 sm:$0xff] %v36
  %s41 = scalar_lea.vmem [#allocation1], 16
  %42 = vst [vmem:[%s41] ss:$2 sm:$0xff] %v37
  %v43 = vld.sshfl [vmem:[#allocation1] sm:$0xff pattern:$0x75316420]
  %v44 = vld.sshfl [vmem:[#allocation1 + $0x8] sm:$0xff pattern:$0x75316420]
  %v45 = vld.sshfl [vmem:[#allocation1 + $0x10] sm:$0xff pattern:$0x75316420]
  %vm46 = vcmask 31744
  %v48 = vsel %vm46, %v23, 0
  %vm50 = vcmask 1043456
  %v51 = vsel %vm50, %v43, 0
  %v53 = vsel %vm50, %v44, 0
  %v55 = vsel %vm50, %v45, 0
  %57 = vmatpush.msra.mxu0 0.0
  %58 = vmatpush.msra.mxu0 0.0
  %59 = vmatpush.msra.mxu0 0.0
  %60 = vmatpush.msra.mxu0 0.0
  %61 = vmatpush.msra.mxu0 0.0
  %62 = vmatpush.msra.mxu0 0.0
  %63 = vmatpush.msra.mxu0 0.0
  %64 = vmatpush.msra.mxu0 0.0
  %65 = vmatpush.msra.mxu0 0.0
  %66 = vmatpush.msra.mxu0 0.0
  %67 = vmatpush.msra.mxu0 0.0
  %68 = vmatpush.msra.mxu0 0.0
  %69 = vmatpush.msra.mxu0 0.0
  %70 = vmatpush.msra.mxu0 0.0
  %71 = vmatpush.msra.mxu0 0.0
  %v72 = vand.u32 %v51, 4294901760
  %73 = vmatpush.msra.mxu0 %v72
  %v74 = vand.u32 %v48, 4294901760
  %v75 = vsub.f32 %v48, %v74
  %v76 = vand.u32 %v75, 4294901760
  %v77 = vsub.f32 %v75, %v76
  %v78 = vand.u32 %v77, 4294901760
  %79 = vmatmul.f32.gmra.mxu0 %v78
  %v80 = vpop.f32.mrf.mxu0
  %v81 = vadd.f32 0.0, %v80
  %82 = vdwg.mxu0
  %83 = vmatpush.msra.mxu0 0.0
  %84 = vmatpush.msra.mxu0 0.0
  %85 = vmatpush.msra.mxu0 0.0
  %86 = vmatpush.msra.mxu0 0.0
  %87 = vmatpush.msra.mxu0 0.0
  %88 = vmatpush.msra.mxu0 0.0
  %89 = vmatpush.msra.mxu0 0.0
  %90 = vmatpush.msra.mxu0 0.0
  %91 = vmatpush.msra.mxu0 0.0
  %92 = vmatpush.msra.mxu0 0.0
  %93 = vmatpush.msra.mxu0 0.0
  %94 = vmatpush.msra.mxu0 0.0
  %95 = vmatpush.msra.mxu0 0.0
  %96 = vmatpush.msra.mxu0 0.0
  %97 = vmatpush.msra.mxu0 0.0
  %v98 = vand.u32 %v51, 4294901760
  %v99 = vsub.f32 %v51, %v98
  %v100 = vand.u32 %v99, 4294901760
  %v101 = vsub.f32 %v99, %v100
  %v102 = vand.u32 %v101, 4294901760
  %103 = vmatpush.msra.mxu0 %v102
  %v104 = vand.u32 %v48, 4294901760
  %105 = vmatmul.f32.gmra.mxu0 %v104
  %v106 = vpop.f32.mrf.mxu0
  %v107 = vadd.f32 %v81, %v106
  %108 = vdwg.mxu0
  %109 = vmatpush.msra.mxu0 0.0
  %110 = vmatpush.msra.mxu0 0.0
  %111 = vmatpush.msra.mxu0 0.0
  %112 = vmatpush.msra.mxu0 0.0
  %113 = vmatpush.msra.mxu0 0.0
  %114 = vmatpush.msra.mxu0 0.0
  %115 = vmatpush.msra.mxu0 0.0
  %116 = vmatpush.msra.mxu0 0.0
  %117 = vmatpush.msra.mxu0 0.0
  %118 = vmatpush.msra.mxu0 0.0
  %119 = vmatpush.msra.mxu0 0.0
  %120 = vmatpush.msra.mxu0 0.0
  %121 = vmatpush.msra.mxu0 0.0
  %122 = vmatpush.msra.mxu0 0.0
  %123 = vmatpush.msra.mxu0 0.0
  %v124 = vand.u32 %v51, 4294901760
  %v125 = vsub.f32 %v51, %v124
  %126 = vmatpush.msra.mxu0 %v125
  %v127 = vand.u32 %v48, 4294901760
  %v128 = vsub.f32 %v48, %v127
  %129 = vmatmul.f32.gmra.mxu0 %v128
  %v130 = vpop.f32.mrf.mxu0
  %v131 = vadd.f32 %v107, %v130
  %132 = vdwg.mxu0
  %133 = vmatpush.msra.mxu0 0.0
  %134 = vmatpush.msra.mxu0 0.0
  %135 = vmatpush.msra.mxu0 0.0
  %136 = vmatpush.msra.mxu0 0.0
  %137 = vmatpush.msra.mxu0 0.0
  %138 = vmatpush.msra.mxu0 0.0
  %139 = vmatpush.msra.mxu0 0.0
  %140 = vmatpush.msra.mxu0 0.0
  %141 = vmatpush.msra.mxu0 0.0
  %142 = vmatpush.msra.mxu0 0.0
  %143 = vmatpush.msra.mxu0 0.0
  %144 = vmatpush.msra.mxu0 0.0
  %145 = vmatpush.msra.mxu0 0.0
  %146 = vmatpush.msra.mxu0 0.0
  %147 = vmatpush.msra.mxu0 0.0
  %v148 = vand.u32 %v51, 4294901760
  %149 = vmatpush.msra.mxu0 %v148
  %v150 = vand.u32 %v48, 4294901760
  %v151 = vsub.f32 %v48, %v150
  %v152 = vand.u32 %v151, 4294901760
  %153 = vmatmul.f32.gmra.mxu0 %v152
  %v154 = vpop.f32.mrf.mxu0
  %v155 = vadd.f32 %v131, %v154
  %156 = vdwg.mxu0
  %157 = vmatpush.msra.mxu0 0.0
  %158 = vmatpush.msra.mxu0 0.0
  %159 = vmatpush.msra.mxu0 0.0
  %160 = vmatpush.msra.mxu0 0.0
  %161 = vmatpush.msra.mxu0 0.0
  %162 = vmatpush.msra.mxu0 0.0
  %163 = vmatpush.msra.mxu0 0.0
  %164 = vmatpush.msra.mxu0 0.0
  %165 = vmatpush.msra.mxu0 0.0
  %166 = vmatpush.msra.mxu0 0.0
  %167 = vmatpush.msra.mxu0 0.0
  %168 = vmatpush.msra.mxu0 0.0
  %169 = vmatpush.msra.mxu0 0.0
  %170 = vmatpush.msra.mxu0 0.0
  %171 = vmatpush.msra.mxu0 0.0
  %v172 = vand.u32 %v51, 4294901760
  %v173 = vsub.f32 %v51, %v172
  %v174 = vand.u32 %v173, 4294901760
  %175 = vmatpush.msra.mxu0 %v174
  %v176 = vand.u32 %v48, 4294901760
  %177 = vmatmul.f32.gmra.mxu0 %v176
  %v178 = vpop.f32.mrf.mxu0
  %v179 = vadd.f32 %v155, %v178
  %180 = vdwg.mxu0
  %181 = vmatpush.msra.mxu0 0.0
  %182 = vmatpush.msra.mxu0 0.0
  %183 = vmatpush.msra.mxu0 0.0
  %184 = vmatpush.msra.mxu0 0.0
  %185 = vmatpush.msra.mxu0 0.0
  %186 = vmatpush.msra.mxu0 0.0
  %187 = vmatpush.msra.mxu0 0.0
  %188 = vmatpush.msra.mxu0 0.0
  %189 = vmatpush.msra.mxu0 0.0
  %190 = vmatpush.msra.mxu0 0.0
  %191 = vmatpush.msra.mxu0 0.0
  %192 = vmatpush.msra.mxu0 0.0
  %193 = vmatpush.msra.mxu0 0.0
  %194 = vmatpush.msra.mxu0 0.0
  %195 = vmatpush.msra.mxu0 0.0
  %v196 = vand.u32 %v51, 4294901760
  %197 = vmatpush.msra.mxu0 %v196
  %v198 = vand.u32 %v48, 4294901760
  %199 = vmatmul.f32.gmra.mxu0 %v198
  %v200 = vpop.f32.mrf.mxu0
  %v201 = vadd.f32 %v179, %v200
  %202 = vdwg.mxu0
  %203 = vmatpush.msra.mxu0 0.0
  %204 = vmatpush.msra.mxu0 0.0
  %205 = vmatpush.msra.mxu0 0.0
  %206 = vmatpush.msra.mxu0 0.0
  %207 = vmatpush.msra.mxu0 0.0
  %208 = vmatpush.msra.mxu0 0.0
  %209 = vmatpush.msra.mxu0 0.0
  %210 = vmatpush.msra.mxu0 0.0
  %211 = vmatpush.msra.mxu0 0.0
  %212 = vmatpush.msra.mxu0 0.0
  %213 = vmatpush.msra.mxu0 0.0
  %214 = vmatpush.msra.mxu0 0.0
  %215 = vmatpush.msra.mxu0 0.0
  %216 = vmatpush.msra.mxu0 0.0
  %217 = vmatpush.msra.mxu0 0.0
  %v218 = vand.u32 %v53, 4294901760
  %219 = vmatpush.msra.mxu0 %v218
  %v220 = vand.u32 %v48, 4294901760
  %v221 = vsub.f32 %v48, %v220
  %v222 = vand.u32 %v221, 4294901760
  %v223 = vsub.f32 %v221, %v222
  %v224 = vand.u32 %v223, 4294901760
  %225 = vmatmul.f32.gmra.mxu0 %v224
  %v226 = vpop.f32.mrf.mxu0
  %v227 = vadd.f32 0.0, %v226
  %228 = vdwg.mxu0
  %229 = vmatpush.msra.mxu0 0.0
  %230 = vmatpush.msra.mxu0 0.0
  %231 = vmatpush.msra.mxu0 0.0
  %232 = vmatpush.msra.mxu0 0.0
  %233 = vmatpush.msra.mxu0 0.0
  %234 = vmatpush.msra.mxu0 0.0
  %235 = vmatpush.msra.mxu0 0.0
  %236 = vmatpush.msra.mxu0 0.0
  %237 = vmatpush.msra.mxu0 0.0
  %238 = vmatpush.msra.mxu0 0.0
  %239 = vmatpush.msra.mxu0 0.0
  %240 = vmatpush.msra.mxu0 0.0
  %241 = vmatpush.msra.mxu0 0.0
  %242 = vmatpush.msra.mxu0 0.0
  %243 = vmatpush.msra.mxu0 0.0
  %v244 = vand.u32 %v53, 4294901760
  %v245 = vsub.f32 %v53, %v244
  %v246 = vand.u32 %v245, 4294901760
  %v247 = vsub.f32 %v245, %v246
  %v248 = vand.u32 %v247, 4294901760
  %249 = vmatpush.msra.mxu0 %v248
  %v250 = vand.u32 %v48, 4294901760
  %251 = vmatmul.f32.gmra.mxu0 %v250
  %v252 = vpop.f32.mrf.mxu0
  %v253 = vadd.f32 %v227, %v252
  %254 = vdwg.mxu0
  %255 = vmatpush.msra.mxu0 0.0
  %256 = vmatpush.msra.mxu0 0.0
  %257 = vmatpush.msra.mxu0 0.0
  %258 = vmatpush.msra.mxu0 0.0
  %259 = vmatpush.msra.mxu0 0.0
  %260 = vmatpush.msra.mxu0 0.0
  %261 = vmatpush.msra.mxu0 0.0
  %262 = vmatpush.msra.mxu0 0.0
  %263 = vmatpush.msra.mxu0 0.0
  %264 = vmatpush.msra.mxu0 0.0
  %265 = vmatpush.msra.mxu0 0.0
  %266 = vmatpush.msra.mxu0 0.0
  %267 = vmatpush.msra.mxu0 0.0
  %268 = vmatpush.msra.mxu0 0.0
  %269 = vmatpush.msra.mxu0 0.0
  %v270 = vand.u32 %v53, 4294901760
  %v271 = vsub.f32 %v53, %v270
  %272 = vmatpush.msra.mxu0 %v271
  %v273 = vand.u32 %v48, 4294901760
  %v274 = vsub.f32 %v48, %v273
  %275 = vmatmul.f32.gmra.mxu0 %v274
  %v276 = vpop.f32.mrf.mxu0
  %v277 = vadd.f32 %v253, %v276
  %278 = vdwg.mxu0
  %279 = vmatpush.msra.mxu0 0.0
  %280 = vmatpush.msra.mxu0 0.0
  %281 = vmatpush.msra.mxu0 0.0
  %282 = vmatpush.msra.mxu0 0.0
  %283 = vmatpush.msra.mxu0 0.0
  %284 = vmatpush.msra.mxu0 0.0
  %285 = vmatpush.msra.mxu0 0.0
  %286 = vmatpush.msra.mxu0 0.0
  %287 = vmatpush.msra.mxu0 0.0
  %288 = vmatpush.msra.mxu0 0.0
  %289 = vmatpush.msra.mxu0 0.0
  %290 = vmatpush.msra.mxu0 0.0
  %291 = vmatpush.msra.mxu0 0.0
  %292 = vmatpush.msra.mxu0 0.0
  %293 = vmatpush.msra.mxu0 0.0
  %v294 = vand.u32 %v53, 4294901760
  %295 = vmatpush.msra.mxu0 %v294
  %v296 = vand.u32 %v48, 4294901760
  %v297 = vsub.f32 %v48, %v296
  %v298 = vand.u32 %v297, 4294901760
  %299 = vmatmul.f32.gmra.mxu0 %v298
  %v300 = vpop.f32.mrf.mxu0
  %v301 = vadd.f32 %v277, %v300
  %302 = vdwg.mxu0
  %303 = vmatpush.msra.mxu0 0.0
  %304 = vmatpush.msra.mxu0 0.0
  %305 = vmatpush.msra.mxu0 0.0
  %306 = vmatpush.msra.mxu0 0.0
  %307 = vmatpush.msra.mxu0 0.0
  %308 = vmatpush.msra.mxu0 0.0
  %309 = vmatpush.msra.mxu0 0.0
  %310 = vmatpush.msra.mxu0 0.0
  %311 = vmatpush.msra.mxu0 0.0
  %312 = vmatpush.msra.mxu0 0.0
  %313 = vmatpush.msra.mxu0 0.0
  %314 = vmatpush.msra.mxu0 0.0
  %315 = vmatpush.msra.mxu0 0.0
  %316 = vmatpush.msra.mxu0 0.0
  %317 = vmatpush.msra.mxu0 0.0
  %v318 = vand.u32 %v53, 4294901760
  %v319 = vsub.f32 %v53, %v318
  %v320 = vand.u32 %v319, 4294901760
  %321 = vmatpush.msra.mxu0 %v320
  %v322 = vand.u32 %v48, 4294901760
  %323 = vmatmul.f32.gmra.mxu0 %v322
  %v324 = vpop.f32.mrf.mxu0
  %v325 = vadd.f32 %v301, %v324
  %326 = vdwg.mxu0
  %327 = vmatpush.msra.mxu0 0.0
  %328 = vmatpush.msra.mxu0 0.0
  %329 = vmatpush.msra.mxu0 0.0
  %330 = vmatpush.msra.mxu0 0.0
  %331 = vmatpush.msra.mxu0 0.0
  %332 = vmatpush.msra.mxu0 0.0
  %333 = vmatpush.msra.mxu0 0.0
  %334 = vmatpush.msra.mxu0 0.0
  %335 = vmatpush.msra.mxu0 0.0
  %336 = vmatpush.msra.mxu0 0.0
  %337 = vmatpush.msra.mxu0 0.0
  %338 = vmatpush.msra.mxu0 0.0
  %339 = vmatpush.msra.mxu0 0.0
  %340 = vmatpush.msra.mxu0 0.0
  %341 = vmatpush.msra.mxu0 0.0
  %v342 = vand.u32 %v53, 4294901760
  %343 = vmatpush.msra.mxu0 %v342
  %v344 = vand.u32 %v48, 4294901760
  %345 = vmatmul.f32.gmra.mxu0 %v344
  %v346 = vpop.f32.mrf.mxu0
  %v347 = vadd.f32 %v325, %v346
  %348 = vdwg.mxu0
  %349 = vmatpush.msra.mxu0 0.0
  %350 = vmatpush.msra.mxu0 0.0
  %351 = vmatpush.msra.mxu0 0.0
  %352 = vmatpush.msra.mxu0 0.0
  %353 = vmatpush.msra.mxu0 0.0
  %354 = vmatpush.msra.mxu0 0.0
  %355 = vmatpush.msra.mxu0 0.0
  %356 = vmatpush.msra.mxu0 0.0
  %357 = vmatpush.msra.mxu0 0.0
  %358 = vmatpush.msra.mxu0 0.0
  %359 = vmatpush.msra.mxu0 0.0
  %360 = vmatpush.msra.mxu0 0.0
  %361 = vmatpush.msra.mxu0 0.0
  %362 = vmatpush.msra.mxu0 0.0
  %363 = vmatpush.msra.mxu0 0.0
  %v364 = vand.u32 %v55, 4294901760
  %365 = vmatpush.msra.mxu0 %v364
  %v366 = vand.u32 %v48, 4294901760
  %v367 = vsub.f32 %v48, %v366
  %v368 = vand.u32 %v367, 4294901760
  %v369 = vsub.f32 %v367, %v368
  %v370 = vand.u32 %v369, 4294901760
  %371 = vmatmul.f32.gmra.mxu0 %v370
  %v372 = vpop.f32.mrf.mxu0
  %v373 = vadd.f32 0.0, %v372
  %374 = vdwg.mxu0
  %375 = vmatpush.msra.mxu0 0.0
  %376 = vmatpush.msra.mxu0 0.0
  %377 = vmatpush.msra.mxu0 0.0
  %378 = vmatpush.msra.mxu0 0.0
  %379 = vmatpush.msra.mxu0 0.0
  %380 = vmatpush.msra.mxu0 0.0
  %381 = vmatpush.msra.mxu0 0.0
  %382 = vmatpush.msra.mxu0 0.0
  %383 = vmatpush.msra.mxu0 0.0
  %384 = vmatpush.msra.mxu0 0.0
  %385 = vmatpush.msra.mxu0 0.0
  %386 = vmatpush.msra.mxu0 0.0
  %387 = vmatpush.msra.mxu0 0.0
  %388 = vmatpush.msra.mxu0 0.0
  %389 = vmatpush.msra.mxu0 0.0
  %v390 = vand.u32 %v55, 4294901760
  %v391 = vsub.f32 %v55, %v390
  %v392 = vand.u32 %v391, 4294901760
  %v393 = vsub.f32 %v391, %v392
  %v394 = vand.u32 %v393, 4294901760
  %395 = vmatpush.msra.mxu0 %v394
  %v396 = vand.u32 %v48, 4294901760
  %397 = vmatmul.f32.gmra.mxu0 %v396
  %v398 = vpop.f32.mrf.mxu0
  %v399 = vadd.f32 %v373, %v398
  %400 = vdwg.mxu0
  %401 = vmatpush.msra.mxu0 0.0
  %402 = vmatpush.msra.mxu0 0.0
  %403 = vmatpush.msra.mxu0 0.0
  %404 = vmatpush.msra.mxu0 0.0
  %405 = vmatpush.msra.mxu0 0.0
  %406 = vmatpush.msra.mxu0 0.0
  %407 = vmatpush.msra.mxu0 0.0
  %408 = vmatpush.msra.mxu0 0.0
  %409 = vmatpush.msra.mxu0 0.0
  %410 = vmatpush.msra.mxu0 0.0
  %411 = vmatpush.msra.mxu0 0.0
  %412 = vmatpush.msra.mxu0 0.0
  %413 = vmatpush.msra.mxu0 0.0
  %414 = vmatpush.msra.mxu0 0.0
  %415 = vmatpush.msra.mxu0 0.0
  %v416 = vand.u32 %v55, 4294901760
  %v417 = vsub.f32 %v55, %v416
  %418 = vmatpush.msra.mxu0 %v417
  %v419 = vand.u32 %v48, 4294901760
  %v420 = vsub.f32 %v48, %v419
  %421 = vmatmul.f32.gmra.mxu0 %v420
  %v422 = vpop.f32.mrf.mxu0
  %v423 = vadd.f32 %v399, %v422
  %424 = vdwg.mxu0
  %425 = vmatpush.msra.mxu0 0.0
  %426 = vmatpush.msra.mxu0 0.0
  %427 = vmatpush.msra.mxu0 0.0
  %428 = vmatpush.msra.mxu0 0.0
  %429 = vmatpush.msra.mxu0 0.0
  %430 = vmatpush.msra.mxu0 0.0
  %431 = vmatpush.msra.mxu0 0.0
  %432 = vmatpush.msra.mxu0 0.0
  %433 = vmatpush.msra.mxu0 0.0
  %434 = vmatpush.msra.mxu0 0.0
  %435 = vmatpush.msra.mxu0 0.0
  %436 = vmatpush.msra.mxu0 0.0
  %437 = vmatpush.msra.mxu0 0.0
  %438 = vmatpush.msra.mxu0 0.0
  %439 = vmatpush.msra.mxu0 0.0
  %v440 = vand.u32 %v55, 4294901760
  %441 = vmatpush.msra.mxu0 %v440
  %v442 = vand.u32 %v48, 4294901760
  %v443 = vsub.f32 %v48, %v442
  %v444 = vand.u32 %v443, 4294901760
  %445 = vmatmul.f32.gmra.mxu0 %v444
  %v446 = vpop.f32.mrf.mxu0
  %v447 = vadd.f32 %v423, %v446
  %448 = vdwg.mxu0
  %449 = vmatpush.msra.mxu0 0.0
  %450 = vmatpush.msra.mxu0 0.0
  %451 = vmatpush.msra.mxu0 0.0
  %452 = vmatpush.msra.mxu0 0.0
  %453 = vmatpush.msra.mxu0 0.0
  %454 = vmatpush.msra.mxu0 0.0
  %455 = vmatpush.msra.mxu0 0.0
  %456 = vmatpush.msra.mxu0 0.0
  %457 = vmatpush.msra.mxu0 0.0
  %458 = vmatpush.msra.mxu0 0.0
  %459 = vmatpush.msra.mxu0 0.0
  %460 = vmatpush.msra.mxu0 0.0
  %461 = vmatpush.msra.mxu0 0.0
  %462 = vmatpush.msra.mxu0 0.0
  %463 = vmatpush.msra.mxu0 0.0
  %v464 = vand.u32 %v55, 4294901760
  %v465 = vsub.f32 %v55, %v464
  %v466 = vand.u32 %v465, 4294901760
  %467 = vmatpush.msra.mxu0 %v466
  %v468 = vand.u32 %v48, 4294901760
  %469 = vmatmul.f32.gmra.mxu0 %v468
  %v470 = vpop.f32.mrf.mxu0
  %v471 = vadd.f32 %v447, %v470
  %472 = vdwg.mxu0
  %473 = vmatpush.msra.mxu0 0.0
  %474 = vmatpush.msra.mxu0 0.0
  %475 = vmatpush.msra.mxu0 0.0
  %476 = vmatpush.msra.mxu0 0.0
  %477 = vmatpush.msra.mxu0 0.0
  %478 = vmatpush.msra.mxu0 0.0
  %479 = vmatpush.msra.mxu0 0.0
  %480 = vmatpush.msra.mxu0 0.0
  %481 = vmatpush.msra.mxu0 0.0
  %482 = vmatpush.msra.mxu0 0.0
  %483 = vmatpush.msra.mxu0 0.0
  %484 = vmatpush.msra.mxu0 0.0
  %485 = vmatpush.msra.mxu0 0.0
  %486 = vmatpush.msra.mxu0 0.0
  %487 = vmatpush.msra.mxu0 0.0
  %v488 = vand.u32 %v55, 4294901760
  %489 = vmatpush.msra.mxu0 %v488
  %v490 = vand.u32 %v48, 4294901760
  %491 = vmatmul.f32.gmra.mxu0 %v490
  %v492 = vpop.f32.mrf.mxu0
  %v493 = vadd.f32 %v471, %v492
  %494 = vdwg.mxu0
  %v495 = vld [vmem:[%s3] sm:$0xff]
  %497 = vset.pattern.permute.xlu0 0
  %498 = vperm.xlu0 %497, %v495
  %v499 = vpop.permute.xlu0 %498
  %v501 = vmul.f32 %v201, %v499
  %v502 = vmul.f32 %v347, %v499
  %v503 = vmul.f32 %v493, %v499
  %v504 = vld [vmem:[%s4] sm:$0xff]
  %506 = vset.pattern.permute.xlu0 0
  %507 = vperm.xlu0 %506, %v504
  %v508 = vpop.permute.xlu0 %507
  %v510 = vadd.f32 %v501, %v508
  %v511 = vadd.f32 %v502, %v508
  %v512 = vadd.f32 %v503, %v508
  %vm513 = vcmp.ge.f32.partialorder %v510, 0.0
  %vm514 = vcmp.ge.f32.partialorder %v511, 0.0
  %vm515 = vcmp.ge.f32.partialorder %v512, 0.0
  %v516 = vld [vmem:[%s5] sm:$0xff]
  %518 = vset.pattern.permute.xlu0 0
  %519 = vperm.xlu0 %518, %v516
  %v520 = vpop.permute.xlu0 %519
  %v522 = vmul.f32 %v520, %v510
  %v523 = vmul.f32 %v520, %v511
  %v524 = vmul.f32 %v520, %v512
  %v525 = vsel %vm513, %v510, %v522
  %v526 = vsel %vm514, %v511, %v523
  %v527 = vsel %vm515, %v512, %v524
  %528 = vst [vmem:[%s6] sm:$0xff] %v525
  %529 = vst [vmem:[%s6 + $0x8] sm:$0xff] %v526
  %530 = vst [vmem:[%s6 + $0x10] sm:$0xff] %v527
  %s531 = scalar_lea.vmem %s0, 12
  %v532 = vld [vmem:[%s531] sm:$0xff]
  %v533 = vld [vmem:[%s531 + $0x8] sm:$0xf]
  %s534 = scalar_lea.vmem %s1, 4
  %v535 = vld [vmem:[%s534] sm:$0xf]
  %537 = vset.pattern.permute.xlu0 0
  %538 = vperm.xlu0 %537, %v535
  %v539 = vpop.permute.xlu0 %538
  %v541 = vunpack.c.l.s4 839922192
  %v542 = vunpack.c.0.s8 %v541
  %v543 = vperm.slane %v539, %v542
  %v545 = vmul.f32 %v532, %v543
  %v546 = vmul.f32 %v533, %v543
  %549 = vst [vmem:[#allocation1] ss:$2 sm:$0xff] %v545
  %s550 = scalar_lea.vmem [#allocation1], 16
  %551 = vst [vmem:[%s550] ss:$2 sm:$0xff] %v546
  %v552 = vld.sshfl [vmem:[#allocation1] sm:$0xff pattern:$0x75316420]
  %v553 = vld.sshfl [vmem:[#allocation1 + $0x8] sm:$0xff pattern:$0x75316420]
  %v554 = vld.sshfl [vmem:[#allocation1 + $0x10] sm:$0xff pattern:$0x75316420]
  %v555 = vsel %vm50, %v552, 0
  %v557 = vsel %vm50, %v553, 0
  %v559 = vsel %vm50, %v554, 0
  %561 = vmatpush.msra.mxu0 0.0
  %562 = vmatpush.msra.mxu0 0.0
  %563 = vmatpush.msra.mxu0 0.0
  %564 = vmatpush.msra.mxu0 0.0
  %565 = vmatpush.msra.mxu0 0.0
  %566 = vmatpush.msra.mxu0 0.0
  %567 = vmatpush.msra.mxu0 0.0
  %568 = vmatpush.msra.mxu0 0.0
  %569 = vmatpush.msra.mxu0 0.0
  %570 = vmatpush.msra.mxu0 0.0
  %571 = vmatpush.msra.mxu0 0.0
  %572 = vmatpush.msra.mxu0 0.0
  %573 = vmatpush.msra.mxu0 0.0
  %574 = vmatpush.msra.mxu0 0.0
  %575 = vmatpush.msra.mxu0 0.0
  %v576 = vand.u32 %v555, 4294901760
  %577 = vmatpush.msra.mxu0 %v576
  %v578 = vand.u32 %v48, 4294901760
  %v579 = vsub.f32 %v48, %v578
  %v580 = vand.u32 %v579, 4294901760
  %v581 = vsub.f32 %v579, %v580
  %v582 = vand.u32 %v581, 4294901760
  %583 = vmatmul.f32.gmra.mxu0 %v582
  %v584 = vpop.f32.mrf.mxu0
  %v585 = vadd.f32 0.0, %v584
  %586 = vdwg.mxu0
  %587 = vmatpush.msra.mxu0 0.0
  %588 = vmatpush.msra.mxu0 0.0
  %589 = vmatpush.msra.mxu0 0.0
  %590 = vmatpush.msra.mxu0 0.0
  %591 = vmatpush.msra.mxu0 0.0
  %592 = vmatpush.msra.mxu0 0.0
  %593 = vmatpush.msra.mxu0 0.0
  %594 = vmatpush.msra.mxu0 0.0
  %595 = vmatpush.msra.mxu0 0.0
  %596 = vmatpush.msra.mxu0 0.0
  %597 = vmatpush.msra.mxu0 0.0
  %598 = vmatpush.msra.mxu0 0.0
  %599 = vmatpush.msra.mxu0 0.0
  %600 = vmatpush.msra.mxu0 0.0
  %601 = vmatpush.msra.mxu0 0.0
  %v602 = vand.u32 %v555, 4294901760
  %v603 = vsub.f32 %v555, %v602
  %v604 = vand.u32 %v603, 4294901760
  %v605 = vsub.f32 %v603, %v604
  %v606 = vand.u32 %v605, 4294901760
  %607 = vmatpush.msra.mxu0 %v606
  %v608 = vand.u32 %v48, 4294901760
  %609 = vmatmul.f32.gmra.mxu0 %v608
  %v610 = vpop.f32.mrf.mxu0
  %v611 = vadd.f32 %v585, %v610
  %612 = vdwg.mxu0
  %613 = vmatpush.msra.mxu0 0.0
  %614 = vmatpush.msra.mxu0 0.0
  %615 = vmatpush.msra.mxu0 0.0
  %616 = vmatpush.msra.mxu0 0.0
  %617 = vmatpush.msra.mxu0 0.0
  %618 = vmatpush.msra.mxu0 0.0
  %619 = vmatpush.msra.mxu0 0.0
  %620 = vmatpush.msra.mxu0 0.0
  %621 = vmatpush.msra.mxu0 0.0
  %622 = vmatpush.msra.mxu0 0.0
  %623 = vmatpush.msra.mxu0 0.0
  %624 = vmatpush.msra.mxu0 0.0
  %625 = vmatpush.msra.mxu0 0.0
  %626 = vmatpush.msra.mxu0 0.0
  %627 = vmatpush.msra.mxu0 0.0
  %v628 = vand.u32 %v555, 4294901760
  %v629 = vsub.f32 %v555, %v628
  %630 = vmatpush.msra.mxu0 %v629
  %v631 = vand.u32 %v48, 4294901760
  %v632 = vsub.f32 %v48, %v631
  %633 = vmatmul.f32.gmra.mxu0 %v632
  %v634 = vpop.f32.mrf.mxu0
  %v635 = vadd.f32 %v611, %v634
  %636 = vdwg.mxu0
  %637 = vmatpush.msra.mxu0 0.0
  %638 = vmatpush.msra.mxu0 0.0
  %639 = vmatpush.msra.mxu0 0.0
  %640 = vmatpush.msra.mxu0 0.0
  %641 = vmatpush.msra.mxu0 0.0
  %642 = vmatpush.msra.mxu0 0.0
  %643 = vmatpush.msra.mxu0 0.0
  %644 = vmatpush.msra.mxu0 0.0
  %645 = vmatpush.msra.mxu0 0.0
  %646 = vmatpush.msra.mxu0 0.0
  %647 = vmatpush.msra.mxu0 0.0
  %648 = vmatpush.msra.mxu0 0.0
  %649 = vmatpush.msra.mxu0 0.0
  %650 = vmatpush.msra.mxu0 0.0
  %651 = vmatpush.msra.mxu0 0.0
  %v652 = vand.u32 %v555, 4294901760
  %653 = vmatpush.msra.mxu0 %v652
  %v654 = vand.u32 %v48, 4294901760
  %v655 = vsub.f32 %v48, %v654
  %v656 = vand.u32 %v655, 4294901760
  %657 = vmatmul.f32.gmra.mxu0 %v656
  %v658 = vpop.f32.mrf.mxu0
  %v659 = vadd.f32 %v635, %v658
  %660 = vdwg.mxu0
  %661 = vmatpush.msra.mxu0 0.0
  %662 = vmatpush.msra.mxu0 0.0
  %663 = vmatpush.msra.mxu0 0.0
  %664 = vmatpush.msra.mxu0 0.0
  %665 = vmatpush.msra.mxu0 0.0
  %666 = vmatpush.msra.mxu0 0.0
  %667 = vmatpush.msra.mxu0 0.0
  %668 = vmatpush.msra.mxu0 0.0
  %669 = vmatpush.msra.mxu0 0.0
  %670 = vmatpush.msra.mxu0 0.0
  %671 = vmatpush.msra.mxu0 0.0
  %672 = vmatpush.msra.mxu0 0.0
  %673 = vmatpush.msra.mxu0 0.0
  %674 = vmatpush.msra.mxu0 0.0
  %675 = vmatpush.msra.mxu0 0.0
  %v676 = vand.u32 %v555, 4294901760
  %v677 = vsub.f32 %v555, %v676
  %v678 = vand.u32 %v677, 4294901760
  %679 = vmatpush.msra.mxu0 %v678
  %v680 = vand.u32 %v48, 4294901760
  %681 = vmatmul.f32.gmra.mxu0 %v680
  %v682 = vpop.f32.mrf.mxu0
  %v683 = vadd.f32 %v659, %v682
  %684 = vdwg.mxu0
  %685 = vmatpush.msra.mxu0 0.0
  %686 = vmatpush.msra.mxu0 0.0
  %687 = vmatpush.msra.mxu0 0.0
  %688 = vmatpush.msra.mxu0 0.0
  %689 = vmatpush.msra.mxu0 0.0
  %690 = vmatpush.msra.mxu0 0.0
  %691 = vmatpush.msra.mxu0 0.0
  %692 = vmatpush.msra.mxu0 0.0
  %693 = vmatpush.msra.mxu0 0.0
  %694 = vmatpush.msra.mxu0 0.0
  %695 = vmatpush.msra.mxu0 0.0
  %696 = vmatpush.msra.mxu0 0.0
  %697 = vmatpush.msra.mxu0 0.0
  %698 = vmatpush.msra.mxu0 0.0
  %699 = vmatpush.msra.mxu0 0.0
  %v700 = vand.u32 %v555, 4294901760
  %701 = vmatpush.msra.mxu0 %v700
  %v702 = vand.u32 %v48, 4294901760
  %703 = vmatmul.f32.gmra.mxu0 %v702
  %v704 = vpop.f32.mrf.mxu0
  %v705 = vadd.f32 %v683, %v704
  %706 = vdwg.mxu0
  %707 = vmatpush.msra.mxu0 0.0
  %708 = vmatpush.msra.mxu0 0.0
  %709 = vmatpush.msra.mxu0 0.0
  %710 = vmatpush.msra.mxu0 0.0
  %711 = vmatpush.msra.mxu0 0.0
  %712 = vmatpush.msra.mxu0 0.0
  %713 = vmatpush.msra.mxu0 0.0
  %714 = vmatpush.msra.mxu0 0.0
  %715 = vmatpush.msra.mxu0 0.0
  %716 = vmatpush.msra.mxu0 0.0
  %717 = vmatpush.msra.mxu0 0.0
  %718 = vmatpush.msra.mxu0 0.0
  %719 = vmatpush.msra.mxu0 0.0
  %720 = vmatpush.msra.mxu0 0.0
  %721 = vmatpush.msra.mxu0 0.0
  %v722 = vand.u32 %v557, 4294901760
  %723 = vmatpush.msra.mxu0 %v722
  %v724 = vand.u32 %v48, 4294901760
  %v725 = vsub.f32 %v48, %v724
  %v726 = vand.u32 %v725, 4294901760
  %v727 = vsub.f32 %v725, %v726
  %v728 = vand.u32 %v727, 4294901760
  %729 = vmatmul.f32.gmra.mxu0 %v728
  %v730 = vpop.f32.mrf.mxu0
  %v731 = vadd.f32 0.0, %v730
  %732 = vdwg.mxu0
  %733 = vmatpush.msra.mxu0 0.0
  %734 = vmatpush.msra.mxu0 0.0
  %735 = vmatpush.msra.mxu0 0.0
  %736 = vmatpush.msra.mxu0 0.0
  %737 = vmatpush.msra.mxu0 0.0
  %738 = vmatpush.msra.mxu0 0.0
  %739 = vmatpush.msra.mxu0 0.0
  %740 = vmatpush.msra.mxu0 0.0
  %741 = vmatpush.msra.mxu0 0.0
  %742 = vmatpush.msra.mxu0 0.0
  %743 = vmatpush.msra.mxu0 0.0
  %744 = vmatpush.msra.mxu0 0.0
  %745 = vmatpush.msra.mxu0 0.0
  %746 = vmatpush.msra.mxu0 0.0
  %747 = vmatpush.msra.mxu0 0.0
  %v748 = vand.u32 %v557, 4294901760
  %v749 = vsub.f32 %v557, %v748
  %v750 = vand.u32 %v749, 4294901760
  %v751 = vsub.f32 %v749, %v750
  %v752 = vand.u32 %v751, 4294901760
  %753 = vmatpush.msra.mxu0 %v752
  %v754 = vand.u32 %v48, 4294901760
  %755 = vmatmul.f32.gmra.mxu0 %v754
  %v756 = vpop.f32.mrf.mxu0
  %v757 = vadd.f32 %v731, %v756
  %758 = vdwg.mxu0
  %759 = vmatpush.msra.mxu0 0.0
  %760 = vmatpush.msra.mxu0 0.0
  %761 = vmatpush.msra.mxu0 0.0
  %762 = vmatpush.msra.mxu0 0.0
  %763 = vmatpush.msra.mxu0 0.0
  %764 = vmatpush.msra.mxu0 0.0
  %765 = vmatpush.msra.mxu0 0.0
  %766 = vmatpush.msra.mxu0 0.0
  %767 = vmatpush.msra.mxu0 0.0
  %768 = vmatpush.msra.mxu0 0.0
  %769 = vmatpush.msra.mxu0 0.0
  %770 = vmatpush.msra.mxu0 0.0
  %771 = vmatpush.msra.mxu0 0.0
  %772 = vmatpush.msra.mxu0 0.0
  %773 = vmatpush.msra.mxu0 0.0
  %v774 = vand.u32 %v557, 4294901760
  %v775 = vsub.f32 %v557, %v774
  %776 = vmatpush.msra.mxu0 %v775
  %v777 = vand.u32 %v48, 4294901760
  %v778 = vsub.f32 %v48, %v777
  %779 = vmatmul.f32.gmra.mxu0 %v778
  %v780 = vpop.f32.mrf.mxu0
  %v781 = vadd.f32 %v757, %v780
  %782 = vdwg.mxu0
  %783 = vmatpush.msra.mxu0 0.0
  %784 = vmatpush.msra.mxu0 0.0
  %785 = vmatpush.msra.mxu0 0.0
  %786 = vmatpush.msra.mxu0 0.0
  %787 = vmatpush.msra.mxu0 0.0
  %788 = vmatpush.msra.mxu0 0.0
  %789 = vmatpush.msra.mxu0 0.0
  %790 = vmatpush.msra.mxu0 0.0
  %791 = vmatpush.msra.mxu0 0.0
  %792 = vmatpush.msra.mxu0 0.0
  %793 = vmatpush.msra.mxu0 0.0
  %794 = vmatpush.msra.mxu0 0.0
  %795 = vmatpush.msra.mxu0 0.0
  %796 = vmatpush.msra.mxu0 0.0
  %797 = vmatpush.msra.mxu0 0.0
  %v798 = vand.u32 %v557, 4294901760
  %799 = vmatpush.msra.mxu0 %v798
  %v800 = vand.u32 %v48, 4294901760
  %v801 = vsub.f32 %v48, %v800
  %v802 = vand.u32 %v801, 4294901760
  %803 = vmatmul.f32.gmra.mxu0 %v802
  %v804 = vpop.f32.mrf.mxu0
  %v805 = vadd.f32 %v781, %v804
  %806 = vdwg.mxu0
  %807 = vmatpush.msra.mxu0 0.0
  %808 = vmatpush.msra.mxu0 0.0
  %809 = vmatpush.msra.mxu0 0.0
  %810 = vmatpush.msra.mxu0 0.0
  %811 = vmatpush.msra.mxu0 0.0
  %812 = vmatpush.msra.mxu0 0.0
  %813 = vmatpush.msra.mxu0 0.0
  %814 = vmatpush.msra.mxu0 0.0
  %815 = vmatpush.msra.mxu0 0.0
  %816 = vmatpush.msra.mxu0 0.0
  %817 = vmatpush.msra.mxu0 0.0
  %818 = vmatpush.msra.mxu0 0.0
  %819 = vmatpush.msra.mxu0 0.0
  %820 = vmatpush.msra.mxu0 0.0
  %821 = vmatpush.msra.mxu0 0.0
  %v822 = vand.u32 %v557, 4294901760
  %v823 = vsub.f32 %v557, %v822
  %v824 = vand.u32 %v823, 4294901760
  %825 = vmatpush.msra.mxu0 %v824
  %v826 = vand.u32 %v48, 4294901760
  %827 = vmatmul.f32.gmra.mxu0 %v826
  %v828 = vpop.f32.mrf.mxu0
  %v829 = vadd.f32 %v805, %v828
  %830 = vdwg.mxu0
  %831 = vmatpush.msra.mxu0 0.0
  %832 = vmatpush.msra.mxu0 0.0
  %833 = vmatpush.msra.mxu0 0.0
  %834 = vmatpush.msra.mxu0 0.0
  %835 = vmatpush.msra.mxu0 0.0
  %836 = vmatpush.msra.mxu0 0.0
  %837 = vmatpush.msra.mxu0 0.0
  %838 = vmatpush.msra.mxu0 0.0
  %839 = vmatpush.msra.mxu0 0.0
  %840 = vmatpush.msra.mxu0 0.0
  %841 = vmatpush.msra.mxu0 0.0
  %842 = vmatpush.msra.mxu0 0.0
  %843 = vmatpush.msra.mxu0 0.0
  %844 = vmatpush.msra.mxu0 0.0
  %845 = vmatpush.msra.mxu0 0.0
  %v846 = vand.u32 %v557, 4294901760
  %847 = vmatpush.msra.mxu0 %v846
  %v848 = vand.u32 %v48, 4294901760
  %849 = vmatmul.f32.gmra.mxu0 %v848
  %v850 = vpop.f32.mrf.mxu0
  %v851 = vadd.f32 %v829, %v850
  %852 = vdwg.mxu0
  %853 = vmatpush.msra.mxu0 0.0
  %854 = vmatpush.msra.mxu0 0.0
  %855 = vmatpush.msra.mxu0 0.0
  %856 = vmatpush.msra.mxu0 0.0
  %857 = vmatpush.msra.mxu0 0.0
  %858 = vmatpush.msra.mxu0 0.0
  %859 = vmatpush.msra.mxu0 0.0
  %860 = vmatpush.msra.mxu0 0.0
  %861 = vmatpush.msra.mxu0 0.0
  %862 = vmatpush.msra.mxu0 0.0
  %863 = vmatpush.msra.mxu0 0.0
  %864 = vmatpush.msra.mxu0 0.0
  %865 = vmatpush.msra.mxu0 0.0
  %866 = vmatpush.msra.mxu0 0.0
  %867 = vmatpush.msra.mxu0 0.0
  %v868 = vand.u32 %v559, 4294901760
  %869 = vmatpush.msra.mxu0 %v868
  %v870 = vand.u32 %v48, 4294901760
  %v871 = vsub.f32 %v48, %v870
  %v872 = vand.u32 %v871, 4294901760
  %v873 = vsub.f32 %v871, %v872
  %v874 = vand.u32 %v873, 4294901760
  %875 = vmatmul.f32.gmra.mxu0 %v874
  %v876 = vpop.f32.mrf.mxu0
  %v877 = vadd.f32 0.0, %v876
  %878 = vdwg.mxu0
  %879 = vmatpush.msra.mxu0 0.0
  %880 = vmatpush.msra.mxu0 0.0
  %881 = vmatpush.msra.mxu0 0.0
  %882 = vmatpush.msra.mxu0 0.0
  %883 = vmatpush.msra.mxu0 0.0
  %884 = vmatpush.msra.mxu0 0.0
  %885 = vmatpush.msra.mxu0 0.0
  %886 = vmatpush.msra.mxu0 0.0
  %887 = vmatpush.msra.mxu0 0.0
  %888 = vmatpush.msra.mxu0 0.0
  %889 = vmatpush.msra.mxu0 0.0
  %890 = vmatpush.msra.mxu0 0.0
  %891 = vmatpush.msra.mxu0 0.0
  %892 = vmatpush.msra.mxu0 0.0
  %893 = vmatpush.msra.mxu0 0.0
  %v894 = vand.u32 %v559, 4294901760
  %v895 = vsub.f32 %v559, %v894
  %v896 = vand.u32 %v895, 4294901760
  %v897 = vsub.f32 %v895, %v896
  %v898 = vand.u32 %v897, 4294901760
  %899 = vmatpush.msra.mxu0 %v898
  %v900 = vand.u32 %v48, 4294901760
  %901 = vmatmul.f32.gmra.mxu0 %v900
  %v902 = vpop.f32.mrf.mxu0
  %v903 = vadd.f32 %v877, %v902
  %904 = vdwg.mxu0
  %905 = vmatpush.msra.mxu0 0.0
  %906 = vmatpush.msra.mxu0 0.0
  %907 = vmatpush.msra.mxu0 0.0
  %908 = vmatpush.msra.mxu0 0.0
  %909 = vmatpush.msra.mxu0 0.0
  %910 = vmatpush.msra.mxu0 0.0
  %911 = vmatpush.msra.mxu0 0.0
  %912 = vmatpush.msra.mxu0 0.0
  %913 = vmatpush.msra.mxu0 0.0
  %914 = vmatpush.msra.mxu0 0.0
  %915 = vmatpush.msra.mxu0 0.0
  %916 = vmatpush.msra.mxu0 0.0
  %917 = vmatpush.msra.mxu0 0.0
  %918 = vmatpush.msra.mxu0 0.0
  %919 = vmatpush.msra.mxu0 0.0
  %v920 = vand.u32 %v559, 4294901760
  %v921 = vsub.f32 %v559, %v920
  %922 = vmatpush.msra.mxu0 %v921
  %v923 = vand.u32 %v48, 4294901760
  %v924 = vsub.f32 %v48, %v923
  %925 = vmatmul.f32.gmra.mxu0 %v924
  %v926 = vpop.f32.mrf.mxu0
  %v927 = vadd.f32 %v903, %v926
  %928 = vdwg.mxu0
  %929 = vmatpush.msra.mxu0 0.0
  %930 = vmatpush.msra.mxu0 0.0
  %931 = vmatpush.msra.mxu0 0.0
  %932 = vmatpush.msra.mxu0 0.0
  %933 = vmatpush.msra.mxu0 0.0
  %934 = vmatpush.msra.mxu0 0.0
  %935 = vmatpush.msra.mxu0 0.0
  %936 = vmatpush.msra.mxu0 0.0
  %937 = vmatpush.msra.mxu0 0.0
  %938 = vmatpush.msra.mxu0 0.0
  %939 = vmatpush.msra.mxu0 0.0
  %940 = vmatpush.msra.mxu0 0.0
  %941 = vmatpush.msra.mxu0 0.0
  %942 = vmatpush.msra.mxu0 0.0
  %943 = vmatpush.msra.mxu0 0.0
  %v944 = vand.u32 %v559, 4294901760
  %945 = vmatpush.msra.mxu0 %v944
  %v946 = vand.u32 %v48, 4294901760
  %v947 = vsub.f32 %v48, %v946
  %v948 = vand.u32 %v947, 4294901760
  %949 = vmatmul.f32.gmra.mxu0 %v948
  %v950 = vpop.f32.mrf.mxu0
  %v951 = vadd.f32 %v927, %v950
  %952 = vdwg.mxu0
  %953 = vmatpush.msra.mxu0 0.0
  %954 = vmatpush.msra.mxu0 0.0
  %955 = vmatpush.msra.mxu0 0.0
  %956 = vmatpush.msra.mxu0 0.0
  %957 = vmatpush.msra.mxu0 0.0
  %958 = vmatpush.msra.mxu0 0.0
  %959 = vmatpush.msra.mxu0 0.0
  %960 = vmatpush.msra.mxu0 0.0
  %961 = vmatpush.msra.mxu0 0.0
  %962 = vmatpush.msra.mxu0 0.0
  %963 = vmatpush.msra.mxu0 0.0
  %964 = vmatpush.msra.mxu0 0.0
  %965 = vmatpush.msra.mxu0 0.0
  %966 = vmatpush.msra.mxu0 0.0
  %967 = vmatpush.msra.mxu0 0.0
  %v968 = vand.u32 %v559, 4294901760
  %v969 = vsub.f32 %v559, %v968
  %v970 = vand.u32 %v969, 4294901760
  %971 = vmatpush.msra.mxu0 %v970
  %v972 = vand.u32 %v48, 4294901760
  %973 = vmatmul.f32.gmra.mxu0 %v972
  %v974 = vpop.f32.mrf.mxu0
  %v975 = vadd.f32 %v951, %v974
  %976 = vdwg.mxu0
  %977 = vmatpush.msra.mxu0 0.0
  %978 = vmatpush.msra.mxu0 0.0
  %979 = vmatpush.msra.mxu0 0.0
  %980 = vmatpush.msra.mxu0 0.0
  %981 = vmatpush.msra.mxu0 0.0
  %982 = vmatpush.msra.mxu0 0.0
  %983 = vmatpush.msra.mxu0 0.0
  %984 = vmatpush.msra.mxu0 0.0
  %985 = vmatpush.msra.mxu0 0.0
  %986 = vmatpush.msra.mxu0 0.0
  %987 = vmatpush.msra.mxu0 0.0
  %988 = vmatpush.msra.mxu0 0.0
  %989 = vmatpush.msra.mxu0 0.0
  %990 = vmatpush.msra.mxu0 0.0
  %991 = vmatpush.msra.mxu0 0.0
  %v992 = vand.u32 %v559, 4294901760
  %993 = vmatpush.msra.mxu0 %v992
  %v994 = vand.u32 %v48, 4294901760
  %995 = vmatmul.f32.gmra.mxu0 %v994
  %v996 = vpop.f32.mrf.mxu0
  %v997 = vadd.f32 %v975, %v996
  %998 = vdwg.mxu0
  %v999 = vld [vmem:[%s3] sm:$0xff]
  %1001 = vset.pattern.permute.xlu0 0
  %1002 = vperm.xlu0 %1001, %v999
  %v1003 = vpop.permute.xlu0 %1002
  %v1005 = vmul.f32 %v705, %v1003
  %v1006 = vmul.f32 %v851, %v1003
  %v1007 = vmul.f32 %v997, %v1003
  %v1008 = vld [vmem:[%s4] sm:$0xff]
  %1010 = vset.pattern.permute.xlu0 0
  %1011 = vperm.xlu0 %1010, %v1008
  %v1012 = vpop.permute.xlu0 %1011
  %v1014 = vadd.f32 %v1005, %v1012
  %v1015 = vadd.f32 %v1006, %v1012
  %v1016 = vadd.f32 %v1007, %v1012
  %vm1017 = vcmp.ge.f32.partialorder %v1014, 0.0
  %vm1018 = vcmp.ge.f32.partialorder %v1015, 0.0
  %vm1019 = vcmp.ge.f32.partialorder %v1016, 0.0
  %v1020 = vld [vmem:[%s5] sm:$0xff]
  %1022 = vset.pattern.permute.xlu0 0
  %1023 = vperm.xlu0 %1022, %v1020
  %v1024 = vpop.permute.xlu0 %1023
  %v1026 = vmul.f32 %v1024, %v1014
  %v1027 = vmul.f32 %v1024, %v1015
  %v1028 = vmul.f32 %v1024, %v1016
  %v1029 = vsel %vm1017, %v1014, %v1026
  %v1030 = vsel %vm1018, %v1015, %v1027
  %v1031 = vsel %vm1019, %v1016, %v1028
  %s1032 = scalar_lea.vmem %s6, 24
  %1033 = vst [vmem:[%s1032] sm:$0xff] %v1029
  %1034 = vst [vmem:[%s1032 + $0x8] sm:$0xff] %v1030
  %1035 = vst [vmem:[%s1032 + $0x10] sm:$0xff] %v1031
  // Predicated region
  $region26: #{dsconv_se_forward.3} parent=0 // pred_check
    _
  $region27: #{dsconv_se_forward.3} parent=0 // pred_check_branch
    %1037 = sbr.rel (0) target = $region29
  $region28: #{dsconv_se_forward.3} parent=0 // pred_region
    _
  $region29: #{dsconv_se_forward.3} parent=0 // pred_fallthru
    _
  // Predicated region
  $region30: #{dsconv_se_forward.3} parent=0 // pred_check
    _
  $region31: #{dsconv_se_forward.3} parent=0 // pred_check_branch
    %1039 = sbr.rel (0) target = $region33
  $region32: #{dsconv_se_forward.3} parent=0 // pred_region
    _
  $region33: #{dsconv_se_forward.3} parent=0 // pred_fallthru
    _

// kernel: dsconv_se_forward.2
$region0: #{dsconv_se_forward.2}
  #allocation0 [shape = 'u32[]', space=smem, size = 0x4, offset = 0x4, fixed_abs, tag = 'smem constant byte address 0x4 - core index']
  #allocation1 [shape = 'u32[72,128]{1,0:T(1,128)}', space=vmem, size = 0x9000, scoped, tag = 'internal scratch']
  %s0 = inlined_call_operand.vmem [shape: f32[1,2,4,422], index: 0, kind: input, shape index: {}]
  %s1 = inlined_call_operand.vmem [shape: f32[9,4,1], index: 1, kind: input, shape index: {}]
  %s2 = inlined_call_operand.vmem [shape: f32[1,1,384], index: 2, kind: input, shape index: {}]
  %s3 = inlined_call_operand.vmem [shape: f32[4,2], index: 3, kind: input, shape index: {}]
  %s4 = inlined_call_operand.vmem [shape: f32[1,2], index: 4, kind: input, shape index: {}]
  %s5 = inlined_call_operand.vmem [shape: f32[1,2], index: 5, kind: input, shape index: {}]
  %s6 = inlined_call_operand.vmem [shape: f32[2,4], index: 6, kind: input, shape index: {}]
  %s7 = inlined_call_operand.vmem [shape: f32[1,4], index: 7, kind: input, shape index: {}]
  %s8 = inlined_call_operand.vmem [shape: f32[2,4,384], index: 8, kind: output, shape index: {0}]
  %s9 = inlined_call_operand.vmem [shape: f32[2,4,1], index: 9, kind: output, shape index: {1}]
  %10 = xla_tuple %s8, %s9
  %s11 = sld [smem:[#allocation0]]
  $region50: #{dsconv_se_forward.2} parent=0
    _
  %s13 = ssub.s32 1, %s11
  %s14 = scalar_select 0, %s13, %s11
  // Predicated region
  $region2: #{dsconv_se_forward.2} parent=0 // pred_check
    _
  $region3: #{dsconv_se_forward.2} parent=0 // pred_check_branch
    %16 = sbr.rel (0) target = $region5
  $region4: #{dsconv_se_forward.2} parent=0 // pred_region
    _
  $region5: #{dsconv_se_forward.2} parent=0 // pred_fallthru
    _
  // Predicated region
  $region6: #{dsconv_se_forward.2} parent=0 // pred_check
    _
  $region7: #{dsconv_se_forward.2} parent=0 // pred_check_branch
    %18 = sbr.rel (0) target = $region9
  $region8: #{dsconv_se_forward.2} parent=0 // pred_region
    _
  $region9: #{dsconv_se_forward.2} parent=0 // pred_fallthru
    _
  // Predicated region
  $region10: #{dsconv_se_forward.2} parent=0 // pred_check
    _
  $region11: #{dsconv_se_forward.2} parent=0 // pred_check_branch
    %20 = sbr.rel (0) target = $region13
  $region12: #{dsconv_se_forward.2} parent=0 // pred_region
    _
  $region13: #{dsconv_se_forward.2} parent=0 // pred_fallthru
    _
  // Predicated region
  $region14: #{dsconv_se_forward.2} parent=0 // pred_check
    _
  $region15: #{dsconv_se_forward.2} parent=0 // pred_check_branch
    %22 = sbr.rel (0) target = $region17
  $region16: #{dsconv_se_forward.2} parent=0 // pred_region
    _
  $region17: #{dsconv_se_forward.2} parent=0 // pred_fallthru
    _
  // Predicated region
  $region18: #{dsconv_se_forward.2} parent=0 // pred_check
    _
  $region19: #{dsconv_se_forward.2} parent=0 // pred_check_branch
    %24 = sbr.rel (0) target = $region21
  $region20: #{dsconv_se_forward.2} parent=0 // pred_region
    _
  $region21: #{dsconv_se_forward.2} parent=0 // pred_fallthru
    _
  // Predicated region
  $region22: #{dsconv_se_forward.2} parent=0 // pred_check
    _
  $region23: #{dsconv_se_forward.2} parent=0 // pred_check_branch
    %26 = sbr.rel (0) target = $region25
  $region24: #{dsconv_se_forward.2} parent=0 // pred_region
    _
  $region25: #{dsconv_se_forward.2} parent=0 // pred_fallthru
    _
  // Predicated region
  $region26: #{dsconv_se_forward.2} parent=0 // pred_check
    _
  $region27: #{dsconv_se_forward.2} parent=0 // pred_check_branch
    %28 = sbr.rel (0) target = $region29
  $region28: #{dsconv_se_forward.2} parent=0 // pred_region
    _
  $region29: #{dsconv_se_forward.2} parent=0 // pred_fallthru
    _
  // Predicated region
  $region30: #{dsconv_se_forward.2} parent=0 // pred_check
    _
  $region31: #{dsconv_se_forward.2} parent=0 // pred_check_branch
    %30 = sbr.rel (0) target = $region33
  $region32: #{dsconv_se_forward.2} parent=0 // pred_region
    _
  $region33: #{dsconv_se_forward.2} parent=0 // pred_fallthru
    _
  %v31 = vld [vmem:[%s0] sm:$0xff]
  %v32 = vld [vmem:[%s0 + $0x8] sm:$0xf]
  %v33 = vld [vmem:[%s0 + $0x10] sm:$0xff]
  %v34 = vld [vmem:[%s0 + $0x18] sm:$0xf]
  %v35 = vld [vmem:[%s1] sm:$0xf]
  %37 = vset.pattern.permute.xlu0 0
  %38 = vperm.xlu0 %37, %v35
  %v39 = vpop.permute.xlu0 %38
  %v41 = vunpack.c.l.s4 839922192
  %v42 = vunpack.c.0.s8 %v41
  %v43 = vperm.slane %v39, %v42
  %v45 = vmul.f32 %v31, %v43
  %v46 = vmul.f32 %v32, %v43
  %v47 = vmul.f32 %v33, %v43
  %v48 = vmul.f32 %v34, %v43
  %v49 = vadd.f32 %v45, 0.0
  %v50 = vadd.f32 %v46, 0.0
  %v51 = vadd.f32 %v47, 0.0
  %v52 = vadd.f32 %v48, 0.0
  %v53 = vld [vmem:[%s0] sm:$0xff]
  %v54 = vld [vmem:[%s0 + $0x8] sm:$0xff]
  %v55 = vld [vmem:[%s0 + $0x10] sm:$0xff]
  %v56 = vld [vmem:[%s0 + $0x18] sm:$0xff]
  %s57 = scalar_lea.vmem %s1, 4
  %v58 = vld [vmem:[%s57] sm:$0xf]
  %60 = vset.pattern.permute.xlu0 0
  %61 = vperm.xlu0 %60, %v58
  %v62 = vpop.permute.xlu0 %61
  %v64 = vunpack.c.l.s4 839922192
  %v65 = vunpack.c.0.s8 %v64
  %v66 = vperm.slane %v62, %v65
  %v68 = vmul.f32 %v53, %v66
  %v69 = vmul.f32 %v54, %v66
  %v70 = vmul.f32 %v55, %v66
  %v71 = vmul.f32 %v56, %v66
  %76 = vrot.lane.b32.xlu0 %v68, 127
  %v77 = vpop.permute.xlu0 %76
  %78 = vrot.lane.b32.xlu0 %v69, 127
  %v79 = vpop.permute.xlu0 %78
  %80 = vrot.lane.b32.xlu0 %v70, 127
  %v81 = vpop.permute.xlu0 %80
  %82 = vrot.lane.b32.xlu0 %v71, 127
  %v83 = vpop.permute.xlu0 %82
  %v84 = vrot.slane %v77, 4
  %v85 = vrot.slane %v79, 4
  %v86 = vrot.slane %v81, 4
  %v87 = vrot.slane %v83, 4
  %vm88 = vcmask 1043456
  %v89 = vsel %vm88, %v84, %v85
  %vm90 = vcmask 1039360
  %v91 = vsel %vm90, %v77, %v89
  %v92 = vsel %vm90, %v79, %v85
  %v93 = vsel %vm88, %v86, %v87
  %v94 = vsel %vm90, %v81, %v93
  %v95 = vsel %vm90, %v83, %v87
  %v100 = vadd.f32 %v49, %v91
  %v101 = vadd.f32 %v50, %v92
  %v102 = vadd.f32 %v51, %v94
  %v103 = vadd.f32 %v52, %v95
  %s104 = scalar_lea.vmem %s1, 8
  %v105 = vld [vmem:[%s104] sm:$0xf]
  %107 = vset.pattern.permute.xlu0 0
  %108 = vperm.xlu0 %107, %v105
  %v109 = vpop.permute.xlu0 %108
  %v111 = vunpack.c.l.s4 839922192
  %v112 = vunpack.c.0.s8 %v111
  %v113 = vperm.slane %v109, %v112
  %v115 = vmul.f32 %v53, %v113
  %v116 = vmul.f32 %v54, %v113
  %v117 = vmul.f32 %v55, %v113
  %v118 = vmul.f32 %v56, %v113
  %123 = vrot.lane.b32.xlu0 %v115, 126
  %v124 = vpop.permute.xlu0 %123
  %125 = vrot.lane.b32.xlu0 %v116, 126
  %v126 = vpop.permute.xlu0 %125
  %127 = vrot.lane.b32.xlu0 %v117, 126
  %v128 = vpop.permute.xlu0 %127
  %129 = vrot.lane.b32.xlu0 %v118, 126
  %v130 = vpop.permute.xlu0 %129
  %v131 = vrot.slane %v124, 4
  %v132 = vrot.slane %v126, 4
  %v133 = vrot.slane %v128, 4
  %v134 = vrot.slane %v130, 4
  %v135 = vsel %vm88, %v131, %v132
  %vm136 = vcmask 1031168
  %v137 = vsel %vm136, %v124, %v135
  %v138 = vsel %vm136, %v126, %v132
  %v139 = vsel %vm88, %v133, %v134
  %v140 = vsel %vm136, %v128, %v139
  %v141 = vsel %vm136, %v130, %v134
  %v146 = vadd.f32 %v100, %v137
  %v147 = vadd.f32 %v101, %v138
  %v148 = vadd.f32 %v102, %v140
  %v149 = vadd.f32 %v103, %v141
  %s150 = scalar_lea.vmem %s1, 12
  %v151 = vld [vmem:[%s150] sm:$0xf]
  %153 = vset.pattern.permute.xlu0 0
  %154 = vperm.xlu0 %153, %v151
  %v155 = vpop.permute.xlu0 %154
  %v157 = vunpack.c.l.s4 839922192
  %v158 = vunpack.c.0.s8 %v157
  %v159 = vperm.slane %v155, %v158
  %v161 = vmul.f32 %v53, %v159
  %v162 = vmul.f32 %v54, %v159
  %v163 = vmul.f32 %v55, %v159
  %v164 = vmul.f32 %v56, %v159
  %169 = vrot.lane.b32.xlu0 %v161, 110
  %v170 = vpop.permute.xlu0 %169
  %171 = vrot.lane.b32.xlu0 %v162, 110
  %v172 = vpop.permute.xlu0 %171
  %173 = vrot.lane.b32.xlu0 %v163, 110
  %v174 = vpop.permute.xlu0 %173
  %175 = vrot.lane.b32.xlu0 %v164, 110
  %v176 = vpop.permute.xlu0 %175
  %v177 = vrot.slane %v170, 4
  %v178 = vrot.slane %v172, 4
  %v179 = vrot.slane %v174, 4
  %v180 = vrot.slane %v176, 4
  %v181 = vsel %vm88, %v177, %v178
  %vm182 = vcmask 900096
  %v183 = vsel %vm182, %v170, %v181
  %v184 = vsel %vm182, %v172, %v178
  %v185 = vsel %vm88, %v179, %v180
  %v186 = vsel %vm182, %v174, %v185
  %v187 = vsel %vm182, %v176, %v180
  %v192 = vadd.f32 %v146, %v183
  %v193 = vadd.f32 %v147, %v184
  %v194 = vadd.f32 %v148, %v186
  %v195 = vadd.f32 %v149, %v187
  %s196 = scalar_lea.vmem %s1, 16
  %v197 = vld [vmem:[%s196] sm:$0xf]
  %199 = vset.pattern.permute.xlu0 0
  %200 = vperm.xlu0 %199, %v197
  %v201 = vpop.permute.xlu0 %200
  %v203 = vunpack.c.l.s4 839922192
  %v204 = vunpack.c.0.s8 %v203
  %v205 = vperm.slane %v201, %v204
  %v207 = vmul.f32 %v53, %v205
  %v208 = vmul.f32 %v54, %v205
  %v209 = vmul.f32 %v55, %v205
  %v210 = vmul.f32 %v56, %v205
  %215 = vrot.lane.b32.xlu0 %v207, 109
  %v216 = vpop.permute.xlu0 %215
  %217 = vrot.lane.b32.xlu0 %v208, 109
  %v218 = vpop.permute.xlu0 %217
  %219 = vrot.lane.b32.xlu0 %v209, 109
  %v220 = vpop.permute.xlu0 %219
  %221 = vrot.lane.b32.xlu0 %v210, 109
  %v222 = vpop.permute.xlu0 %221
  %v223 = vrot.slane %v216, 4
  %v224 = vrot.slane %v218, 4
  %v225 = vrot.slane %v220, 4
  %v226 = vrot.slane %v222, 4
  %v227 = vsel %vm88, %v223, %v224
  %vm228 = vcmask 891904
  %v229 = vsel %vm228, %v216, %v227
  %v230 = vsel %vm228, %v218, %v224
  %v231 = vsel %vm88, %v225, %v226
  %v232 = vsel %vm228, %v220, %v231
  %v233 = vsel %vm228, %v222, %v226
  %v238 = vadd.f32 %v192, %v229
  %v239 = vadd.f32 %v193, %v230
  %v240 = vadd.f32 %v194, %v232
  %v241 = vadd.f32 %v195, %v233
  %s242 = scalar_lea.vmem %s1, 20
  %v243 = vld [vmem:[%s242] sm:$0xf]
  %245 = vset.pattern.permute.xlu0 0
  %246 = vperm.xlu0 %245, %v243
  %v247 = vpop.permute.xlu0 %246
  %v249 = vunpack.c.l.s4 839922192
  %v250 = vunpack.c.0.s8 %v249
  %v251 = vperm.slane %v247, %v250
  %v253 = vmul.f32 %v53, %v251
  %v254 = vmul.f32 %v54, %v251
  %v255 = vmul.f32 %v55, %v251
  %v256 = vmul.f32 %v56, %v251
  %261 = vrot.lane.b32.xlu0 %v253, 108
  %v262 = vpop.permute.xlu0 %261
  %263 = vrot.lane.b32.xlu0 %v254, 108
  %v264 = vpop.permute.xlu0 %263
  %265 = vrot.lane.b32.xlu0 %v255, 108
  %v266 = vpop.permute.xlu0 %265
  %267 = vrot.lane.b32.xlu0 %v256, 108
  %v268 = vpop.permute.xlu0 %267
  %v269 = vrot.slane %v262, 4
  %v270 = vrot.slane %v264, 4
  %v271 = vrot.slane %v266, 4
  %v272 = vrot.slane %v268, 4
  %v273 = vsel %vm88, %v269, %v270
  %vm274 = vcmask 883712
  %v275 = vsel %vm274, %v262, %v273
  %v276 = vsel %vm274, %v264, %v270
  %v277 = vsel %vm88, %v271, %v272
  %v278 = vsel %vm274, %v266, %v277
  %v279 = vsel %vm274, %v268, %v272
  %v284 = vadd.f32 %v238, %v275
  %v285 = vadd.f32 %v239, %v276
  %v286 = vadd.f32 %v240, %v278
  %v287 = vadd.f32 %v241, %v279
  %s288 = scalar_lea.vmem %s1, 24
  %v289 = vld [vmem:[%s288] sm:$0xf]
  %291 = vset.pattern.permute.xlu0 0
  %292 = vperm.xlu0 %291, %v289
  %v293 = vpop.permute.xlu0 %292
  %v295 = vunpack.c.l.s4 839922192
  %v296 = vunpack.c.0.s8 %v295
  %v297 = vperm.slane %v293, %v296
  %v299 = vmul.f32 %v53, %v297
  %v300 = vmul.f32 %v54, %v297
  %v301 = vmul.f32 %v55, %v297
  %v302 = vmul.f32 %v56, %v297
  %307 = vrot.lane.b32.xlu0 %v299, 92
  %v308 = vpop.permute.xlu0 %307
  %309 = vrot.lane.b32.xlu0 %v300, 92
  %v310 = vpop.permute.xlu0 %309
  %311 = vrot.lane.b32.xlu0 %v301, 92
  %v312 = vpop.permute.xlu0 %311
  %313 = vrot.lane.b32.xlu0 %v302, 92
  %v314 = vpop.permute.xlu0 %313
  %v315 = vrot.slane %v308, 4
  %v316 = vrot.slane %v310, 4
  %v317 = vrot.slane %v312, 4
  %v318 = vrot.slane %v314, 4
  %v319 = vsel %vm88, %v315, %v316
  %vm320 = vcmask 752640
  %v321 = vsel %vm320, %v308, %v319
  %v322 = vsel %vm320, %v310, %v316
  %v323 = vsel %vm88, %v317, %v318
  %v324 = vsel %vm320, %v312, %v323
  %v325 = vsel %vm320, %v314, %v318
  %v330 = vadd.f32 %v284, %v321
  %v331 = vadd.f32 %v285, %v322
  %v332 = vadd.f32 %v286, %v324
  %v333 = vadd.f32 %v287, %v325
  %s334 = scalar_lea.vmem %s1, 28
  %v335 = vld [vmem:[%s334] sm:$0xf]
  %337 = vset.pattern.permute.xlu0 0
  %338 = vperm.xlu0 %337, %v335
  %v339 = vpop.permute.xlu0 %338
  %v341 = vunpack.c.l.s4 839922192
  %v342 = vunpack.c.0.s8 %v341
  %v343 = vperm.slane %v339, %v342
  %v345 = vmul.f32 %v53, %v343
  %v346 = vmul.f32 %v54, %v343
  %v347 = vmul.f32 %v55, %v343
  %v348 = vmul.f32 %v56, %v343
  %353 = vrot.lane.b32.xlu0 %v345, 91
  %v354 = vpop.permute.xlu0 %353
  %355 = vrot.lane.b32.xlu0 %v346, 91
  %v356 = vpop.permute.xlu0 %355
  %357 = vrot.lane.b32.xlu0 %v347, 91
  %v358 = vpop.permute.xlu0 %357
  %359 = vrot.lane.b32.xlu0 %v348, 91
  %v360 = vpop.permute.xlu0 %359
  %v361 = vrot.slane %v354, 4
  %v362 = vrot.slane %v356, 4
  %v363 = vrot.slane %v358, 4
  %v364 = vrot.slane %v360, 4
  %v365 = vsel %vm88, %v361, %v362
  %vm366 = vcmask 744448
  %v367 = vsel %vm366, %v354, %v365
  %v368 = vsel %vm366, %v356, %v362
  %v369 = vsel %vm88, %v363, %v364
  %v370 = vsel %vm366, %v358, %v369
  %v371 = vsel %vm366, %v360, %v364
  %v376 = vadd.f32 %v330, %v367
  %v377 = vadd.f32 %v331, %v368
  %v378 = vadd.f32 %v332, %v370
  %v379 = vadd.f32 %v333, %v371
  %s380 = scalar_lea.vmem %s1, 32
  %v381 = vld [vmem:[%s380] sm:$0xf]
  %383 = vset.pattern.permute.xlu0 0
  %384 = vperm.xlu0 %383, %v381
  %v385 = vpop.permute.xlu0 %384
  %v387 = vunpack.c.l.s4 839922192
  %v388 = vunpack.c.0.s8 %v387
  %v389 = vperm.slane %v385, %v388
  %v391 = vmul.f32 %v53, %v389
  %v392 = vmul.f32 %v54, %v389
  %v393 = vmul.f32 %v55, %v389
  %v394 = vmul.f32 %v56, %v389
  %399 = vrot.lane.b32.xlu0 %v391, 90
  %v400 = vpop.permute.xlu0 %399
  %401 = vrot.lane.b32.xlu0 %v392, 90
  %v402 = vpop.permute.xlu0 %401
  %403 = vrot.lane.b32.xlu0 %v393, 90
  %v404 = vpop.permute.xlu0 %403
  %405 = vrot.lane.b32.xlu0 %v394, 90
  %v406 = vpop.permute.xlu0 %405
  %v407 = vrot.slane %v400, 4
  %v408 = vrot.slane %v402, 4
  %v409 = vrot.slane %v404, 4
  %v410 = vrot.slane %v406, 4
  %v411 = vsel %vm88, %v407, %v408
  %vm412 = vcmask 736256
  %v413 = vsel %vm412, %v400, %v411
  %v414 = vsel %vm412, %v402, %v408
  %v415 = vsel %vm88, %v409, %v410
  %v416 = vsel %vm412, %v404, %v415
  %v417 = vsel %vm412, %v406, %v410
  %v422 = vadd.f32 %v376, %v413
  %v423 = vadd.f32 %v377, %v414
  %v424 = vadd.f32 %v378, %v416
  %v425 = vadd.f32 %v379, %v417
  %426 = vst [vmem:[%s8] sm:$0xff] %v422
  %427 = vst [vmem:[%s8 + $0x8] sm:$0xf] %v423
  %428 = vst [vmem:[%s8 + $0xc] sm:$0xff] %v424
  %429 = vst [vmem:[%s8 + $0x14] sm:$0xf] %v425
  %v430 = vld [vmem:[%s2] sm:$0x7]
  %v432 = vperm.slane %v430, 0
  %v433 = vperm.slane %v430, 1
  %v434 = vperm.slane %v430, 2
  %v436 = vrot.slane %v433, 4
  %v437 = vsel %vm88, %v432, %v436
  %v439 = vmul.f32 %v422, %v437
  %v440 = vmul.f32 %v423, %v434
  %v441 = vmul.f32 %v424, %v437
  %v442 = vmul.f32 %v425, %v434
  %447 = vst [vmem:[#allocation1] ss:$2 sm:$0xff] %v439
  %s448 = scalar_lea.vmem [#allocation1], 16
  %449 = vst [vmem:[%s448] ss:$2 sm:$0xff] %v440
  %v450 = vld.sshfl [vmem:[#allocation1] sm:$0xff pattern:$0x75316420]
  %v451 = vld.sshfl [vmem:[#allocation1 + $0x8] sm:$0xff pattern:$0x75316420]
  %v452 = vld.sshfl [vmem:[#allocation1 + $0x10] sm:$0xff pattern:$0x75316420]
  %s453 = scalar_lea.vmem [#allocation1], 32
  %454 = vst [vmem:[%s453] ss:$2 sm:$0xff] %v441
  %s455 = scalar_lea.vmem [#allocation1], 48
  %456 = vst [vmem:[%s455] ss:$2 sm:$0xff] %v442
  %v457 = vld.sshfl [vmem:[#allocation1 + $0x20] sm:$0xff pattern:$0x75316420]
  %v458 = vld.sshfl [vmem:[#allocation1 + $0x28] sm:$0xff pattern:$0x75316420]
  %v459 = vld.sshfl [vmem:[#allocation1 + $0x30] sm:$0xff pattern:$0x75316420]
  %v466 = vsel %vm88, %v450, 0.0
  %v467 = vsel %vm88, %v451, 0.0
  %v468 = vadd.f32 %v466, %v467
  %v469 = vsel %vm88, %v452, 0.0
  %v470 = vadd.f32 %v468, %v469
  %471 = vadd.xlane.f32.xlu0 %v470
  %v472 = vpop.xlane.xlu0 %471
  %v473 = vsel %vm88, %v457, 0.0
  %v474 = vsel %vm88, %v458, 0.0
  %v475 = vadd.f32 %v473, %v474
  %v476 = vsel %vm88, %v459, 0.0
  %v477 = vadd.f32 %v475, %v476
  %478 = vadd.xlane.f32.xlu0 %v477
  %v479 = vpop.xlane.xlu0 %478
  %v480 = vmul.f32 %v472, 0.00390625
  %v481 = vmul.f32 %v479, 0.00390625
  %v482 = vld [vmem:[%s3] sm:$0xf]
  %v483 = vld [vmem:[%s4] sm:$0x1]
  %v485 = vperm.slane %v483, 0
  %v489 = vlaneseq
  %v490 = vand.u32 %v489, 127
  %v491 = vperm.slane %v480, %v490
  %v492 = vperm.slane %v481, %v490
  %vm493 = vcmask 1041409
  %v494 = vsel %vm493, %v492, %v491
  %vm495 = vcmask 31744
  %v496 = vsel %vm495, %v494, 0
  %v499 = vsel %vm88, %v482, 0
  %501 = vmatpush.msra.mxu0 0.0
  %502 = vmatpush.msra.mxu0 0.0
  %503 = vmatpush.msra.mxu0 0.0
  %504 = vmatpush.msra.mxu0 0.0
  %505 = vmatpush.msra.mxu0 0.0
  %506 = vmatpush.msra.mxu0 0.0
  %507 = vmatpush.msra.mxu0 0.0
  %508 = vmatpush.msra.mxu0 0.0
  %509 = vmatpush.msra.mxu0 0.0
  %510 = vmatpush.msra.mxu0 0.0
  %511 = vmatpush.msra.mxu0 0.0
  %512 = vmatpush.msra.mxu0 0.0
  %513 = vmatpush.msra.mxu0 0.0
  %514 = vmatpush.msra.mxu0 0.0
  %515 = vmatpush.msra.mxu0 0.0
  %v516 = vand.u32 %v499, 4294901760
  %517 = vmatpush.msra.mxu0 %v516
  %v518 = vand.u32 %v496, 4294901760
  %v519 = vsub.f32 %v496, %v518
  %v520 = vand.u32 %v519, 4294901760
  %v521 = vsub.f32 %v519, %v520
  %v522 = vand.u32 %v521, 4294901760
  %523 = vmatmul.f32.gmra.mxu0 %v522
  %v524 = vpop.f32.mrf.mxu0
  %v525 = vadd.f32 %v485, %v524
  %526 = vdwg.mxu0
  %527 = vmatpush.msra.mxu0 0.0
  %528 = vmatpush.msra.mxu0 0.0
  %529 = vmatpush.msra.mxu0 0.0
  %530 = vmatpush.msra.mxu0 0.0
  %531 = vmatpush.msra.mxu0 0.0
  %532 = vmatpush.msra.mxu0 0.0
  %533 = vmatpush.msra.mxu0 0.0
  %534 = vmatpush.msra.mxu0 0.0
  %535 = vmatpush.msra.mxu0 0.0
  %536 = vmatpush.msra.mxu0 0.0
  %537 = vmatpush.msra.mxu0 0.0
  %538 = vmatpush.msra.mxu0 0.0
  %539 = vmatpush.msra.mxu0 0.0
  %540 = vmatpush.msra.mxu0 0.0
  %541 = vmatpush.msra.mxu0 0.0
  %v542 = vand.u32 %v499, 4294901760
  %v543 = vsub.f32 %v499, %v542
  %v544 = vand.u32 %v543, 4294901760
  %v545 = vsub.f32 %v543, %v544
  %v546 = vand.u32 %v545, 4294901760
  %547 = vmatpush.msra.mxu0 %v546
  %v548 = vand.u32 %v496, 4294901760
  %549 = vmatmul.f32.gmra.mxu0 %v548
  %v550 = vpop.f32.mrf.mxu0
  %v551 = vadd.f32 %v525, %v550
  %552 = vdwg.mxu0
  %553 = vmatpush.msra.mxu0 0.0
  %554 = vmatpush.msra.mxu0 0.0
  %555 = vmatpush.msra.mxu0 0.0
  %556 = vmatpush.msra.mxu0 0.0
  %557 = vmatpush.msra.mxu0 0.0
  %558 = vmatpush.msra.mxu0 0.0
  %559 = vmatpush.msra.mxu0 0.0
  %560 = vmatpush.msra.mxu0 0.0
  %561 = vmatpush.msra.mxu0 0.0
  %562 = vmatpush.msra.mxu0 0.0
  %563 = vmatpush.msra.mxu0 0.0
  %564 = vmatpush.msra.mxu0 0.0
  %565 = vmatpush.msra.mxu0 0.0
  %566 = vmatpush.msra.mxu0 0.0
  %567 = vmatpush.msra.mxu0 0.0
  %v568 = vand.u32 %v499, 4294901760
  %v569 = vsub.f32 %v499, %v568
  %570 = vmatpush.msra.mxu0 %v569
  %v571 = vand.u32 %v496, 4294901760
  %v572 = vsub.f32 %v496, %v571
  %573 = vmatmul.f32.gmra.mxu0 %v572
  %v574 = vpop.f32.mrf.mxu0
  %v575 = vadd.f32 %v551, %v574
  %576 = vdwg.mxu0
  %577 = vmatpush.msra.mxu0 0.0
  %578 = vmatpush.msra.mxu0 0.0
  %579 = vmatpush.msra.mxu0 0.0
  %580 = vmatpush.msra.mxu0 0.0
  %581 = vmatpush.msra.mxu0 0.0
  %582 = vmatpush.msra.mxu0 0.0
  %583 = vmatpush.msra.mxu0 0.0
  %584 = vmatpush.msra.mxu0 0.0
  %585 = vmatpush.msra.mxu0 0.0
  %586 = vmatpush.msra.mxu0 0.0
  %587 = vmatpush.msra.mxu0 0.0
  %588 = vmatpush.msra.mxu0 0.0
  %589 = vmatpush.msra.mxu0 0.0
  %590 = vmatpush.msra.mxu0 0.0
  %591 = vmatpush.msra.mxu0 0.0
  %v592 = vand.u32 %v499, 4294901760
  %593 = vmatpush.msra.mxu0 %v592
  %v594 = vand.u32 %v496, 4294901760
  %v595 = vsub.f32 %v496, %v594
  %v596 = vand.u32 %v595, 4294901760
  %597 = vmatmul.f32.gmra.mxu0 %v596
  %v598 = vpop.f32.mrf.mxu0
  %v599 = vadd.f32 %v575, %v598
  %600 = vdwg.mxu0
  %601 = vmatpush.msra.mxu0 0.0
  %602 = vmatpush.msra.mxu0 0.0
  %603 = vmatpush.msra.mxu0 0.0
  %604 = vmatpush.msra.mxu0 0.0
  %605 = vmatpush.msra.mxu0 0.0
  %606 = vmatpush.msra.mxu0 0.0
  %607 = vmatpush.msra.mxu0 0.0
  %608 = vmatpush.msra.mxu0 0.0
  %609 = vmatpush.msra.mxu0 0.0
  %610 = vmatpush.msra.mxu0 0.0
  %611 = vmatpush.msra.mxu0 0.0
  %612 = vmatpush.msra.mxu0 0.0
  %613 = vmatpush.msra.mxu0 0.0
  %614 = vmatpush.msra.mxu0 0.0
  %615 = vmatpush.msra.mxu0 0.0
  %v616 = vand.u32 %v499, 4294901760
  %v617 = vsub.f32 %v499, %v616
  %v618 = vand.u32 %v617, 4294901760
  %619 = vmatpush.msra.mxu0 %v618
  %v620 = vand.u32 %v496, 4294901760
  %621 = vmatmul.f32.gmra.mxu0 %v620
  %v622 = vpop.f32.mrf.mxu0
  %v623 = vadd.f32 %v599, %v622
  %624 = vdwg.mxu0
  %625 = vmatpush.msra.mxu0 0.0
  %626 = vmatpush.msra.mxu0 0.0
  %627 = vmatpush.msra.mxu0 0.0
  %628 = vmatpush.msra.mxu0 0.0
  %629 = vmatpush.msra.mxu0 0.0
  %630 = vmatpush.msra.mxu0 0.0
  %631 = vmatpush.msra.mxu0 0.0
  %632 = vmatpush.msra.mxu0 0.0
  %633 = vmatpush.msra.mxu0 0.0
  %634 = vmatpush.msra.mxu0 0.0
  %635 = vmatpush.msra.mxu0 0.0
  %636 = vmatpush.msra.mxu0 0.0
  %637 = vmatpush.msra.mxu0 0.0
  %638 = vmatpush.msra.mxu0 0.0
  %639 = vmatpush.msra.mxu0 0.0
  %v640 = vand.u32 %v499, 4294901760
  %641 = vmatpush.msra.mxu0 %v640
  %v642 = vand.u32 %v496, 4294901760
  %643 = vmatmul.f32.gmra.mxu0 %v642
  %v644 = vpop.f32.mrf.mxu0
  %v645 = vadd.f32 %v623, %v644
  %646 = vdwg.mxu0
  %vm647 = vcmp.ge.f32.partialorder %v645, 0.0
  %v648 = vld [vmem:[%s5] sm:$0x1]
  %v650 = vperm.slane %v648, 0
  %v652 = vmul.f32 %v650, %v645
  %v653 = vsel %vm647, %v645, %v652
  %v654 = vld [vmem:[%s6] sm:$0x3]
  %v655 = vld [vmem:[%s7] sm:$0x1]
  %v657 = vperm.slane %v655, 0
  %vm659 = vcmask 15360
  %v661 = vsel %vm659, %v653, 0
  %vm663 = vcmask 1041408
  %v665 = vsel %vm663, %v654, 0
  %667 = vmatpush.msra.mxu0 0.0
  %668 = vmatpush.msra.mxu0 0.0
  %669 = vmatpush.msra.mxu0 0.0
  %670 = vmatpush.msra.mxu0 0.0
  %671 = vmatpush.msra.mxu0 0.0
  %672 = vmatpush.msra.mxu0 0.0
  %673 = vmatpush.msra.mxu0 0.0
  %674 = vmatpush.msra.mxu0 0.0
  %675 = vmatpush.msra.mxu0 0.0
  %676 = vmatpush.msra.mxu0 0.0
  %677 = vmatpush.msra.mxu0 0.0
  %678 = vmatpush.msra.mxu0 0.0
  %679 = vmatpush.msra.mxu0 0.0
  %680 = vmatpush.msra.mxu0 0.0
  %681 = vmatpush.msra.mxu0 0.0
  %v682 = vand.u32 %v665, 4294901760
  %683 = vmatpush.msra.mxu0 %v682
  %v684 = vand.u32 %v661, 4294901760
  %v685 = vsub.f32 %v661, %v684
  %v686 = vand.u32 %v685, 4294901760
  %v687 = vsub.f32 %v685, %v686
  %v688 = vand.u32 %v687, 4294901760
  %689 = vmatmul.f32.gmra.mxu0 %v688
  %v690 = vpop.f32.mrf.mxu0
  %v691 = vadd.f32 %v657, %v690
  %692 = vdwg.mxu0
  %693 = vmatpush.msra.mxu0 0.0
  %694 = vmatpush.msra.mxu0 0.0
  %695 = vmatpush.msra.mxu0 0.0
  %696 = vmatpush.msra.mxu0 0.0
  %697 = vmatpush.msra.mxu0 0.0
  %698 = vmatpush.msra.mxu0 0.0
  %699 = vmatpush.msra.mxu0 0.0
  %700 = vmatpush.msra.mxu0 0.0
  %701 = vmatpush.msra.mxu0 0.0
  %702 = vmatpush.msra.mxu0 0.0
  %703 = vmatpush.msra.mxu0 0.0
  %704 = vmatpush.msra.mxu0 0.0
  %705 = vmatpush.msra.mxu0 0.0
  %706 = vmatpush.msra.mxu0 0.0
  %707 = vmatpush.msra.mxu0 0.0
  %v708 = vand.u32 %v665, 4294901760
  %v709 = vsub.f32 %v665, %v708
  %v710 = vand.u32 %v709, 4294901760
  %v711 = vsub.f32 %v709, %v710
  %v712 = vand.u32 %v711, 4294901760
  %713 = vmatpush.msra.mxu0 %v712
  %v714 = vand.u32 %v661, 4294901760
  %715 = vmatmul.f32.gmra.mxu0 %v714
  %v716 = vpop.f32.mrf.mxu0
  %v717 = vadd.f32 %v691, %v716
  %718 = vdwg.mxu0
  %719 = vmatpush.msra.mxu0 0.0
  %720 = vmatpush.msra.mxu0 0.0
  %721 = vmatpush.msra.mxu0 0.0
  %722 = vmatpush.msra.mxu0 0.0
  %723 = vmatpush.msra.mxu0 0.0
  %724 = vmatpush.msra.mxu0 0.0
  %725 = vmatpush.msra.mxu0 0.0
  %726 = vmatpush.msra.mxu0 0.0
  %727 = vmatpush.msra.mxu0 0.0
  %728 = vmatpush.msra.mxu0 0.0
  %729 = vmatpush.msra.mxu0 0.0
  %730 = vmatpush.msra.mxu0 0.0
  %731 = vmatpush.msra.mxu0 0.0
  %732 = vmatpush.msra.mxu0 0.0
  %733 = vmatpush.msra.mxu0 0.0
  %v734 = vand.u32 %v665, 4294901760
  %v735 = vsub.f32 %v665, %v734
  %736 = vmatpush.msra.mxu0 %v735
  %v737 = vand.u32 %v661, 4294901760
  %v738 = vsub.f32 %v661, %v737
  %739 = vmatmul.f32.gmra.mxu0 %v738
  %v740 = vpop.f32.mrf.mxu0
  %v741 = vadd.f32 %v717, %v740
  %742 = vdwg.mxu0
  %743 = vmatpush.msra.mxu0 0.0
  %744 = vmatpush.msra.mxu0 0.0
  %745 = vmatpush.msra.mxu0 0.0
  %746 = vmatpush.msra.mxu0 0.0
  %747 = vmatpush.msra.mxu0 0.0
  %748 = vmatpush.msra.mxu0 0.0
  %749 = vmatpush.msra.mxu0 0.0
  %750 = vmatpush.msra.mxu0 0.0
  %751 = vmatpush.msra.mxu0 0.0
  %752 = vmatpush.msra.mxu0 0.0
  %753 = vmatpush.msra.mxu0 0.0
  %754 = vmatpush.msra.mxu0 0.0
  %755 = vmatpush.msra.mxu0 0.0
  %756 = vmatpush.msra.mxu0 0.0
  %757 = vmatpush.msra.mxu0 0.0
  %v758 = vand.u32 %v665, 4294901760
  %759 = vmatpush.msra.mxu0 %v758
  %v760 = vand.u32 %v661, 4294901760
  %v761 = vsub.f32 %v661, %v760
  %v762 = vand.u32 %v761, 4294901760
  %763 = vmatmul.f32.gmra.mxu0 %v762
  %v764 = vpop.f32.mrf.mxu0
  %v765 = vadd.f32 %v741, %v764
  %766 = vdwg.mxu0
  %767 = vmatpush.msra.mxu0 0.0
  %768 = vmatpush.msra.mxu0 0.0
  %769 = vmatpush.msra.mxu0 0.0
  %770 = vmatpush.msra.mxu0 0.0
  %771 = vmatpush.msra.mxu0 0.0
  %772 = vmatpush.msra.mxu0 0.0
  %773 = vmatpush.msra.mxu0 0.0
  %774 = vmatpush.msra.mxu0 0.0
  %775 = vmatpush.msra.mxu0 0.0
  %776 = vmatpush.msra.mxu0 0.0
  %777 = vmatpush.msra.mxu0 0.0
  %778 = vmatpush.msra.mxu0 0.0
  %779 = vmatpush.msra.mxu0 0.0
  %780 = vmatpush.msra.mxu0 0.0
  %781 = vmatpush.msra.mxu0 0.0
  %v782 = vand.u32 %v665, 4294901760
  %v783 = vsub.f32 %v665, %v782
  %v784 = vand.u32 %v783, 4294901760
  %785 = vmatpush.msra.mxu0 %v784
  %v786 = vand.u32 %v661, 4294901760
  %787 = vmatmul.f32.gmra.mxu0 %v786
  %v788 = vpop.f32.mrf.mxu0
  %v789 = vadd.f32 %v765, %v788
  %790 = vdwg.mxu0
  %791 = vmatpush.msra.mxu0 0.0
  %792 = vmatpush.msra.mxu0 0.0
  %793 = vmatpush.msra.mxu0 0.0
  %794 = vmatpush.msra.mxu0 0.0
  %795 = vmatpush.msra.mxu0 0.0
  %796 = vmatpush.msra.mxu0 0.0
  %797 = vmatpush.msra.mxu0 0.0
  %798 = vmatpush.msra.mxu0 0.0
  %799 = vmatpush.msra.mxu0 0.0
  %800 = vmatpush.msra.mxu0 0.0
  %801 = vmatpush.msra.mxu0 0.0
  %802 = vmatpush.msra.mxu0 0.0
  %803 = vmatpush.msra.mxu0 0.0
  %804 = vmatpush.msra.mxu0 0.0
  %805 = vmatpush.msra.mxu0 0.0
  %v806 = vand.u32 %v665, 4294901760
  %807 = vmatpush.msra.mxu0 %v806
  %v808 = vand.u32 %v661, 4294901760
  %809 = vmatmul.f32.gmra.mxu0 %v808
  %v810 = vpop.f32.mrf.mxu0
  %v811 = vadd.f32 %v789, %v810
  %812 = vdwg.mxu0
  %v813 = vperm.slane %v811, 0
  %v814 = vlaneseq
  %v815 = vshrl.u32 %v814, 7
  %817 = vset.pattern.permute.xlu0 %v815
  %818 = vperm.xlu0 %817, %v813
  %v819 = vpop.permute.xlu0 %818
  %v820 = vperm.slane %v811, 1
  %v821 = vlaneseq
  %v822 = vshrl.u32 %v821, 7
  %824 = vset.pattern.permute.xlu0 %v822
  %825 = vperm.xlu0 %824, %v820
  %v826 = vpop.permute.xlu0 %825
  %vm827 = vcmask 3072
  %828 = vst.msk [vmem:[%s9] sm:$0xf] %vm827, %v819
  %829 = vst.msk [vmem:[%s9 + $0x4] sm:$0xf] %vm827, %v826
  // Predicated region
  $region34: #{dsconv_se_forward.2} parent=0 // pred_check
    _
  $region35: #{dsconv_se_forward.2} parent=0 // pred_check_branch
    %831 = sbr.rel (0) target = $region37
  $region36: #{dsconv_se_forward.2} parent=0 // pred_region
    _
  $region37: #{dsconv_se_forward.2} parent=0 // pred_fallthru
    _
  // Predicated region
  $region38: #{dsconv_se_forward.2} parent=0 // pred_check
    _
  $region39: #{dsconv_se_forward.2} parent=0 // pred_check_branch
    %833 = sbr.rel (0) target = $region41
  $region40: #{dsconv_se_forward.2} parent=0 // pred_region
    _
  $region41: #{dsconv_se_forward.2} parent=0 // pred_fallthru
    _
  // Predicated region
  $region42: #{dsconv_se_forward.2} parent=0 // pred_check
    _
  $region43: #{dsconv_se_forward.2} parent=0 // pred_check_branch
    %835 = sbr.rel (0) target = $region45
  $region44: #{dsconv_se_forward.2} parent=0 // pred_region
    _
  $region45: #{dsconv_se_forward.2} parent=0 // pred_fallthru
    _
  // Predicated region
  $region46: #{dsconv_se_forward.2} parent=0 // pred_check
    _
  $region47: #{dsconv_se_forward.2} parent=0 // pred_check_branch
    %837 = sbr.rel (0) target = $region49
  $region48: #{dsconv_se_forward.2} parent=0 // pred_region
    _
  $region49: #{dsconv_se_forward.2} parent=0 // pred_fallthru
    _

</llo_original>
